<compile_context>
chip_gen: v7x
topology: tpu7x:2x2x1
jax: 0.10.0
libtpu: 0.0.40
codegen_flags: <defaults>
</compile_context>

<pallas_src>
import functools
import math

import jax
import jax.numpy as jnp
from jax.experimental import pallas as pl
from jax.experimental.pallas import tpu as pltpu


def _lora_qkv_kernel(x_ref, wqkv_ref, bias_ref, a_ref, b_ref, out_ref, *, dim):
    """One tile of rows: qkv = x@Wqkv + b ; q += x@Aq@Bq ; v += x@Av@Bv."""
    x = x_ref[...]                                                     # (TM, C)  bf16

    # Main QKV projection on the MXU, f32 accumulation; bias kept/added in f32.
    qkv = jnp.dot(x, wqkv_ref[...],
                  preferred_element_type=jnp.float32) + bias_ref[...]  # (TM, 3C) f32

    # Fused LoRA path: one x @ [Aq|Av] push, then one block-diagonal B push producing
    # a lane-aligned (TM, 2C) delta (cols [:C] -> q, cols [C:] -> v).
    h = jnp.dot(x, a_ref[...], preferred_element_type=jnp.float32)     # (TM, 2r) f32
    delta = jnp.dot(h.astype(x.dtype), b_ref[...],
                    preferred_element_type=jnp.float32)                # (TM, 2C) f32

    # Direct slice stores -- no concatenate, no extra (TM, 3C) temp, all adds in f32.
    out_ref[:, :dim] = (qkv[:, :dim] + delta[:, :dim]).astype(out_ref.dtype)
    out_ref[:, dim:2 * dim] = qkv[:, dim:2 * dim].astype(out_ref.dtype)
    out_ref[:, 2 * dim:] = (qkv[:, 2 * dim:] + delta[:, dim:]).astype(out_ref.dtype)


def prepare_lora_qkv_params(params, compute_dtype=jnp.bfloat16):
    """One-time (model-load) prep: transpose to (in, out), fuse LoRA mats, cast to bf16."""
    C = params["wqkv"].shape[1]
    r = params["aq"].shape[0]

    wqkv_t = jnp.asarray(params["wqkv"]).T.astype(compute_dtype)            # (C, 3C)
    bias = jnp.asarray(params["bqkv"]).reshape(1, 3 * C).astype(jnp.float32)  # (1, 3C) f32

    # Fused A: x @ [Aq^T | Av^T]  -> (TM, 2r)
    a_fused = jnp.concatenate(
        [jnp.asarray(params["aq"]).T, jnp.asarray(params["av"]).T], axis=1
    ).astype(compute_dtype)                                                  # (C, 2r)

    # Block-diagonal B: [[Bq^T, 0], [0, Bv^T]]  -> (2r, 2C)
    b_fused = jnp.zeros((2 * r, 2 * C), dtype=jnp.float32)
    b_fused = b_fused.at[:r, :C].set(jnp.asarray(params["bq"]).T)
    b_fused = b_fused.at[r:, C:].set(jnp.asarray(params["bv"]).T)
    b_fused = b_fused.astype(compute_dtype)                                  # (2r, 2C)

    return {"wqkv_t": wqkv_t, "bias": bias, "a_fused": a_fused, "b_fused": b_fused,
            "dim": C, "rank": r, "compute_dtype": compute_dtype}


def _pick_tile_m(M, requested):
    """Largest divisor of M that is <= requested, preferring multiples of 8 (sublanes)."""
    best = 1
    for tm in range(min(requested, M), 0, -1):
        if M % tm == 0:
            if tm % 8 == 0:
                return tm
            if best == 1:
                best = tm
    return best


def _nbytes(shape, dtype):
    return math.prod(shape) * jnp.dtype(dtype).itemsize


def lora_qkv_forward(x, prepped, *, tile_m=256):
    """x: (B, H, W, C).  Returns (B, H, W, 3C) in x's dtype."""
    B, H, W, C = x.shape
    assert C == prepped["dim"]
    M = B * H * W
    out_dtype = x.dtype
    cdt = prepped["compute_dtype"]
    r = prepped["rank"]

    tm = _pick_tile_m(M, tile_m)
    grid = (M // tm,)

    x_flat = x.reshape(M, C).astype(cdt)

    full = lambda shape: pl.BlockSpec(shape, lambda i: (0, 0))

    # VMEM budget: every block double-buffered; add headroom. Safe for v7x's 64 MiB VMEM.
    block_bytes = (
        _nbytes((tm, C), cdt)             # x tile
        + _nbytes((C, 3 * C), cdt)        # Wqkv^T
        + _nbytes((1, 3 * C), jnp.float32)  # bias
        + _nbytes((C, 2 * r), cdt)        # fused A
        + _nbytes((2 * r, 2 * C), cdt)    # block-diag B
        + _nbytes((tm, 3 * C), out_dtype)  # out tile
    )
    vmem_limit = min(int(2.5 * block_bytes) + (2 << 20), 96 << 20)

    cost = pl.CostEstimate(
        flops=2 * M * C * 3 * C + 2 * M * C * 2 * r + 2 * M * 2 * r * 2 * C,
        transcendentals=0,
        bytes_accessed=(_nbytes((M, C), cdt) + _nbytes((C, 3 * C), cdt)
                        + _nbytes((1, 3 * C), jnp.float32) + _nbytes((C, 2 * r), cdt)
                        + _nbytes((2 * r, 2 * C), cdt) + _nbytes((M, 3 * C), out_dtype)),
    )

    out_flat = pl.pallas_call(
        functools.partial(_lora_qkv_kernel, dim=C),
        out_shape=jax.ShapeDtypeStruct((M, 3 * C), out_dtype),
        grid_spec=pltpu.PrefetchScalarGridSpec(
            num_scalar_prefetch=0,
            grid=grid,
            in_specs=[
                pl.BlockSpec((tm, C), lambda i: (i, 0)),   # x tile
                full((C, 3 * C)),                          # Wqkv^T           (bf16)
                full((1, 3 * C)),                          # bias             (f32)
                full((C, 2 * r)),                          # fused LoRA A     (bf16)
                full((2 * r, 2 * C)),                      # block-diag LoRA B(bf16)
            ],
            out_specs=pl.BlockSpec((tm, 3 * C), lambda i: (i, 0)),
        ),
        compiler_params=pltpu.CompilerParams(
            dimension_semantics=("parallel",),
            vmem_limit_bytes=vmem_limit,
        ),
        cost_estimate=cost,
    )(x_flat, prepped["wqkv_t"], prepped["bias"], prepped["a_fused"], prepped["b_fused"])

    return out_flat.reshape(B, H, W, 3 * C)


def _reference(x, params):
    """Pure-JAX f32 reference mirroring the PyTorch forward exactly."""
    B, H, W, C = x.shape
    qkv = x @ params["wqkv"].T + params["bqkv"]
    new_q = (x @ params["aq"].T) @ params["bq"].T
    new_v = (x @ params["av"].T) @ params["bv"].T
    qkv = qkv.at[..., :C].add(new_q)
    qkv = qkv.at[..., 2 * C:].add(new_v)
    return qkv


if __name__ == "__main__":
    # Lane-aligned small demo: C = 128 (multiple of 128 like SAM's 768/1280), M = 512 rows
    # so grid = 2 with tile_m = 256 (keeps both v7x TensorCores busy).
    B, H, W, C = 2, 16, 16, 128
    R = 4                                  # LoRA rank

    key = jax.random.PRNGKey(0)
    kx, kw, kb, k1, k2, k3, k4 = jax.random.split(key, 7)

    x = jax.random.normal(kx, (B, H, W, C), dtype=jnp.float32)

    # Deterministic synthetic parameters, PyTorch Linear convention (out_features, in_features).
    params = {
        "wqkv": jax.random.normal(kw, (3 * C, C), dtype=jnp.float32) * 0.05,
        "bqkv": jax.random.normal(kb, (3 * C,), dtype=jnp.float32) * 0.05,
        "aq": jax.random.normal(k1, (R, C), dtype=jnp.float32) * 0.05,   # linear_a_q
        "bq": jax.random.normal(k2, (C, R), dtype=jnp.float32) * 0.05,   # linear_b_q
        "av": jax.random.normal(k3, (R, C), dtype=jnp.float32) * 0.05,   # linear_a_v
        "bv": jax.random.normal(k4, (C, R), dtype=jnp.float32) * 0.05,   # linear_b_v
    }

    prepped = prepare_lora_qkv_params(params)           # one-time, at "model load"
    out = jax.block_until_ready(lora_qkv_forward(x, prepped))
    ref = jax.block_until_ready(_reference(x, params))

    assert out.shape == (B, H, W, 3 * C)
    # bf16 MXU inputs with f32 accumulation vs. a pure-f32 reference -> bf16-level tolerance.
    assert jnp.allclose(out, ref, atol=2e-2, rtol=2e-2), "mismatch vs reference"
    print("KERNEL_OK")
</pallas_src>

<mosaic_0001>
module attributes {stable_mosaic.version = 11 : i64} {
  func.func @_lora_qkv_kernel(%arg0: i32, %arg1: memref<256x128xbf16, #tpu.memory_space<vmem>>, %arg2: memref<128x384xbf16, #tpu.memory_space<vmem>>, %arg3: memref<1x384xf32, #tpu.memory_space<vmem>>, %arg4: memref<128x8xbf16, #tpu.memory_space<vmem>>, %arg5: memref<8x256xbf16, #tpu.memory_space<vmem>>, %arg6: memref<256x384xf32, #tpu.memory_space<vmem>>) attributes {dimension_semantics = [#tpu.dimension_semantics<parallel>], iteration_bounds = array<i64: 2>, scalar_prefetch = 0 : i64, scratch_operands = 0 : i64, tpu.core_type = #tpu.core_type<tc>, window_params = [{transform_indices = @transform_0, window_bounds = array<i64: 256, 128>}, {pipeline_mode = #tpu.pipeline_mode<synchronous>, transform_indices = @transform_1, window_bounds = array<i64: 128, 384>}, {pipeline_mode = #tpu.pipeline_mode<synchronous>, transform_indices = @transform_2, window_bounds = array<i64: 1, 384>}, {pipeline_mode = #tpu.pipeline_mode<synchronous>, transform_indices = @transform_3, window_bounds = array<i64: 128, 8>}, {pipeline_mode = #tpu.pipeline_mode<synchronous>, transform_indices = @transform_4, window_bounds = array<i64: 8, 256>}, {transform_indices = @transform_5, window_bounds = array<i64: 256, 384>}]} {
    %c0 = arith.constant 0 : index
    %c0_0 = arith.constant 0 : index
    %0 = vector.load %arg1[%c0, %c0_0] : memref<256x128xbf16, #tpu.memory_space<vmem>>, vector<256x128xbf16>
    %c0_1 = arith.constant 0 : index
    %c0_2 = arith.constant 0 : index
    %1 = vector.load %arg2[%c0_1, %c0_2] : memref<128x384xbf16, #tpu.memory_space<vmem>>, vector<128x384xbf16>
    %cst = arith.constant dense<0.000000e+00> : vector<256x384xf32>
    %2 = tpu.matmul %0, %1, %cst {dimension_numbers = #tpu.dot_dimension_numbers<[1], [0], [0], [1], [0, 0, 1, 1], [], []>} : vector<256x128xbf16>, vector<128x384xbf16>, vector<256x384xf32> -> vector<256x384xf32>
    %c0_3 = arith.constant 0 : index
    %c0_4 = arith.constant 0 : index
    %3 = vector.load %arg3[%c0_3, %c0_4] : memref<1x384xf32, #tpu.memory_space<vmem>>, vector<1x384xf32>
    %4 = vector.broadcast %3 : vector<1x384xf32> to vector<256x384xf32>
    %5 = arith.addf %2, %4 : vector<256x384xf32>
    %c0_5 = arith.constant 0 : index
    %c0_6 = arith.constant 0 : index
    %6 = vector.load %arg4[%c0_5, %c0_6] : memref<128x8xbf16, #tpu.memory_space<vmem>>, vector<128x8xbf16>
    %cst_7 = arith.constant dense<0.000000e+00> : vector<256x8xf32>
    %7 = tpu.matmul %0, %6, %cst_7 {dimension_numbers = #tpu.dot_dimension_numbers<[1], [0], [0], [1], [0, 0, 1, 1], [], []>} : vector<256x128xbf16>, vector<128x8xbf16>, vector<256x8xf32> -> vector<256x8xf32>
    %8 = arith.truncf %7 : vector<256x8xf32> to vector<256x8xbf16>
    %c0_8 = arith.constant 0 : index
    %c0_9 = arith.constant 0 : index
    %9 = vector.load %arg5[%c0_8, %c0_9] : memref<8x256xbf16, #tpu.memory_space<vmem>>, vector<8x256xbf16>
    %cst_10 = arith.constant dense<0.000000e+00> : vector<256x256xf32>
    %10 = tpu.matmul %8, %9, %cst_10 {dimension_numbers = #tpu.dot_dimension_numbers<[1], [0], [0], [1], [0, 0, 1, 1], [], []>} : vector<256x8xbf16>, vector<8x256xbf16>, vector<256x256xf32> -> vector<256x256xf32>
    %11 = vector.extract_strided_slice %5 {offsets = [0, 0], sizes = [256, 128], strides = [1, 1]} : vector<256x384xf32> to vector<256x128xf32>
    %12 = vector.extract_strided_slice %10 {offsets = [0, 0], sizes = [256, 128], strides = [1, 1]} : vector<256x256xf32> to vector<256x128xf32>
    %13 = arith.addf %11, %12 : vector<256x128xf32>
    %c0_11 = arith.constant 0 : index
    %c0_12 = arith.constant 0 : index
    %14 = vector.load %arg6[%c0_11, %c0_12] : memref<256x384xf32, #tpu.memory_space<vmem>>, vector<256x128xf32>
    tpu.vector_store %arg6[%c0_11, %c0_12], %13 {strides = array<i32>} : memref<256x384xf32, #tpu.memory_space<vmem>>, vector<256x128xf32>,
    %15 = vector.extract_strided_slice %5 {offsets = [0, 128], sizes = [256, 128], strides = [1, 1]} : vector<256x384xf32> to vector<256x128xf32>
    %c0_13 = arith.constant 0 : index
    %c128 = arith.constant 128 : index
    %16 = vector.load %arg6[%c0_13, %c128] : memref<256x384xf32, #tpu.memory_space<vmem>>, vector<256x128xf32>
    tpu.vector_store %arg6[%c0_13, %c128], %15 {strides = array<i32>} : memref<256x384xf32, #tpu.memory_space<vmem>>, vector<256x128xf32>,
    %17 = vector.extract_strided_slice %5 {offsets = [0, 256], sizes = [256, 128], strides = [1, 1]} : vector<256x384xf32> to vector<256x128xf32>
    %18 = vector.extract_strided_slice %10 {offsets = [0, 128], sizes = [256, 128], strides = [1, 1]} : vector<256x256xf32> to vector<256x128xf32>
    %19 = arith.addf %17, %18 : vector<256x128xf32>
    %c0_14 = arith.constant 0 : index
    %c256 = arith.constant 256 : index
    %20 = vector.load %arg6[%c0_14, %c256] : memref<256x384xf32, #tpu.memory_space<vmem>>, vector<256x128xf32>
    tpu.vector_store %arg6[%c0_14, %c256], %19 {strides = array<i32>} : memref<256x384xf32, #tpu.memory_space<vmem>>, vector<256x128xf32>,
    return
  }
  func.func @transform_0(%arg0: i32) -> (i32, i32) {
    %c0_i32 = arith.constant 0 : i32
    %c0_i32_0 = arith.constant 0 : i32
    return %arg0, %c0_i32 : i32, i32
  }
  func.func @transform_1(%arg0: i32) -> (i32, i32) {
    %c0_i32 = arith.constant 0 : i32
    %c0_i32_0 = arith.constant 0 : i32
    %c0_i32_1 = arith.constant 0 : i32
    return %c0_i32, %c0_i32_0 : i32, i32
  }
  func.func @transform_2(%arg0: i32) -> (i32, i32) {
    %c0_i32 = arith.constant 0 : i32
    %c0_i32_0 = arith.constant 0 : i32
    %c0_i32_1 = arith.constant 0 : i32
    return %c0_i32, %c0_i32_0 : i32, i32
  }
  func.func @transform_3(%arg0: i32) -> (i32, i32) {
    %c0_i32 = arith.constant 0 : i32
    %c0_i32_0 = arith.constant 0 : i32
    %c0_i32_1 = arith.constant 0 : i32
    return %c0_i32, %c0_i32_0 : i32, i32
  }
  func.func @transform_4(%arg0: i32) -> (i32, i32) {
    %c0_i32 = arith.constant 0 : i32
    %c0_i32_0 = arith.constant 0 : i32
    %c0_i32_1 = arith.constant 0 : i32
    return %c0_i32, %c0_i32_0 : i32, i32
  }
  func.func @transform_5(%arg0: i32) -> (i32, i32) {
    %c0_i32 = arith.constant 0 : i32
    %c0_i32_0 = arith.constant 0 : i32
    return %arg0, %c0_i32 : i32, i32
  }
}

</mosaic_0001>

<llo_original>
// kernel: tpu_custom_call.1
$region0: #{tpu_custom_call.1}
  #allocation0 [shape = 'u32[]', space=smem, size = 0x4, offset = 0x4, fixed_abs, tag = 'smem constant byte address 0x4 - core index']
  #allocation1 [shape = 'u32[144,128]{1,0:T(1,128)}', space=vmem, size = 0x12000, scoped, tag = 'internal scratch']
  %s0 = inlined_call_operand.hbm [shape: bf16[512,128], index: 0, kind: input, shape index: {}]
  %s1 = inlined_call_operand.hbm [shape: bf16[128,384], index: 1, kind: input, shape index: {}]
  %s2 = inlined_call_operand.vmem [shape: f32[1,384], index: 2, kind: input, shape index: {}]
  %s3 = inlined_call_operand.vmem [shape: bf16[128,8], index: 3, kind: input, shape index: {}]
  %s4 = inlined_call_operand.vmem [shape: bf16[8,256], index: 4, kind: input, shape index: {}]
  %s5 = inlined_call_operand.hbm [shape: f32[512,384], index: 5, kind: output, shape index: {}]
  %s6 = sld [smem:[#allocation0]]
  $region61: #{tpu_custom_call.1} parent=0
    _
  %s8 = ssub.s32 1, %s6
  %s9 = scalar_select 0, %s8, %s6
  $region1: #{tpu_custom_call.1} parent=0
    #allocation2 [shape = 'u8[131072]{0}', space=vmem, size = 0x20000, scoped, tag = 'input window, operand 0']
    #allocation3 [shape = 's32[2]{0}', space=sflag, size = 0x8, scoped, tag = 'scoped memory for tpu_custom_call.1']
    #allocation4 [shape = 's32[2]{0}', space=sflag, size = 0x8, scoped, tag = 'scoped memory for tpu_custom_call.1']
    #allocation5 [shape = 'u8[98304]{0}', space=vmem, size = 0x18000, scoped, tag = 'input window, operand 1, single buffered']
    #allocation6 [shape = 's32[1]{0}', space=sflag, size = 0x4, scoped, tag = 'scoped memory for tpu_custom_call.1']
    #allocation7 [shape = 'u8[786432]{0}', space=vmem, size = 0xc0000, scoped, tag = 'output window, operand 0']
    %10 = vsyncpa [#allocation3], 0
    %s11 = scalar_lea.sflag [#allocation3], 1
    %12 = vsyncpa %s11, 0
    %13 = vsyncpa [#allocation6], 0
    %14 = vsyncpa [#allocation4], 0
    %s15 = scalar_lea.sflag [#allocation4], 1
    %16 = vsyncpa %s15, 0
    loop: start=0, step=1, limit=4
    $region2: #{tpu_custom_call.1} parent=1 // loop_pre_header
      _
    $region3: #{tpu_custom_call.1} parent=1 // loop_header
      %s18 = sphi 0, %s22
      %p19 = scmp.ge.s32.totalorder %s18, 4
      %s28 = sphi 0, %s30
      %s31 = sphi 0, %s28
      %s32 = sphi 0, %s31
      %s48 = sphi 0, %s32
      %s52 = sphi 0, %s52
      %s54 = sphi 0, %s52
      %s55 = sphi 0, %s54
      %s69 = sphi 0, %s55
      %s73 = sphi 0, %s73
      %s75 = sphi 0, %s73
      %s76 = sphi 0, %s75
      %s90 = sphi 0, %s76
      %s94 = sphi 0, %s94
      %s96 = sphi 0, %s94
      %s97 = sphi 0, %s96
      %s111 = sphi 0, %s97
      %s115 = sphi 0, %s115
      %s117 = sphi 0, %s115
      %s118 = sphi 0, %s117
      %s132 = sphi 0, %s118
      %s138 = sphi 0, %s140
      %s141 = sphi 0, %s138
      %s142 = sphi 0, %s141
      %s158 = sphi 0, %s142
    $region4: #{tpu_custom_call.1} parent=1 // loop_header_branch
      %21 = sbr.rel (%p19) target = $region8
    $region5: #{tpu_custom_call.1} parent=1 // loop_body
      %s23 = ssub.s32 %s18, 1
      %s24 = ssub.s32 %s18, 2
      %s25 = sadd.s32 %s18, 1
      %s26 = ssub.s32 %s18, %s25
      %p27 = scmp.eq.s32.totalorder %s26, 0
      %s29 = sadd.s32 %s28, 1
      %s30 = scalar_select %p27, %s28, %s29
      %p33 = pneg %p27
      %p34 = scmp.eq.s32.totalorder %s18, 1
      %p35 = por %p33, %p34
      %p36 = scmp.ne.s32.totalorder %s28, %s31
      %p37 = scmp.eq.s32.totalorder %s18, 0
      %p38 = por %p36, %p37
      %p39 = scmp.ne.s32.totalorder %s28, %s31
      %p40 = scmp.eq.s32.totalorder %s23, 1
      %p41 = por %p39, %p40
      %p42 = scmp.ne.s32.totalorder %s31, %s32
      %p43 = scmp.eq.s32.totalorder %s23, 0
      %p44 = por %p42, %p43
      %p45 = scmp.ne.s32.totalorder %s31, %s32
      %p46 = scmp.eq.s32.totalorder %s24, 1
      %p47 = por %p45, %p46
      %p49 = scmp.ne.s32.totalorder %s32, %s48
      %p50 = scmp.eq.s32.totalorder %s24, 0
      %p51 = por %p49, %p50
      %s53 = sadd.s32 %s52, 1
      %p56 = scmp.eq.s32.totalorder %s18, 1
      %p57 = scmp.ne.s32.totalorder %s52, %s54
      %p58 = scmp.eq.s32.totalorder %s18, 0
      %p59 = por %p57, %p58
      %p60 = scmp.ne.s32.totalorder %s52, %s54
      %p61 = scmp.eq.s32.totalorder %s23, 1
      %p62 = por %p60, %p61
      %p63 = scmp.ne.s32.totalorder %s54, %s55
      %p64 = scmp.eq.s32.totalorder %s23, 0
      %p65 = por %p63, %p64
      %p66 = scmp.ne.s32.totalorder %s54, %s55
      %p67 = scmp.eq.s32.totalorder %s24, 1
      %p68 = por %p66, %p67
      %p70 = scmp.ne.s32.totalorder %s55, %s69
      %p71 = scmp.eq.s32.totalorder %s24, 0
      %p72 = por %p70, %p71
      %s74 = sadd.s32 %s73, 1
      %p77 = scmp.eq.s32.totalorder %s18, 1
      %p78 = scmp.ne.s32.totalorder %s73, %s75
      %p79 = scmp.eq.s32.totalorder %s18, 0
      %p80 = por %p78, %p79
      %p81 = scmp.ne.s32.totalorder %s73, %s75
      %p82 = scmp.eq.s32.totalorder %s23, 1
      %p83 = por %p81, %p82
      %p84 = scmp.ne.s32.totalorder %s75, %s76
      %p85 = scmp.eq.s32.totalorder %s23, 0
      %p86 = por %p84, %p85
      %p87 = scmp.ne.s32.totalorder %s75, %s76
      %p88 = scmp.eq.s32.totalorder %s24, 1
      %p89 = por %p87, %p88
      %p91 = scmp.ne.s32.totalorder %s76, %s90
      %p92 = scmp.eq.s32.totalorder %s24, 0
      %p93 = por %p91, %p92
      %s95 = sadd.s32 %s94, 1
      %p98 = scmp.eq.s32.totalorder %s18, 1
      %p99 = scmp.ne.s32.totalorder %s94, %s96
      %p100 = scmp.eq.s32.totalorder %s18, 0
      %p101 = por %p99, %p100
      %p102 = scmp.ne.s32.totalorder %s94, %s96
      %p103 = scmp.eq.s32.totalorder %s23, 1
      %p104 = por %p102, %p103
      %p105 = scmp.ne.s32.totalorder %s96, %s97
      %p106 = scmp.eq.s32.totalorder %s23, 0
      %p107 = por %p105, %p106
      %p108 = scmp.ne.s32.totalorder %s96, %s97
      %p109 = scmp.eq.s32.totalorder %s24, 1
      %p110 = por %p108, %p109
      %p112 = scmp.ne.s32.totalorder %s97, %s111
      %p113 = scmp.eq.s32.totalorder %s24, 0
      %p114 = por %p112, %p113
      %s116 = sadd.s32 %s115, 1
      %p119 = scmp.eq.s32.totalorder %s18, 1
      %p120 = scmp.ne.s32.totalorder %s115, %s117
      %p121 = scmp.eq.s32.totalorder %s18, 0
      %p122 = por %p120, %p121
      %p123 = scmp.ne.s32.totalorder %s115, %s117
      %p124 = scmp.eq.s32.totalorder %s23, 1
      %p125 = por %p123, %p124
      %p126 = scmp.ne.s32.totalorder %s117, %s118
      %p127 = scmp.eq.s32.totalorder %s23, 0
      %p128 = por %p126, %p127
      %p129 = scmp.ne.s32.totalorder %s117, %s118
      %p130 = scmp.eq.s32.totalorder %s24, 1
      %p131 = por %p129, %p130
      %p133 = scmp.ne.s32.totalorder %s118, %s132
      %p134 = scmp.eq.s32.totalorder %s24, 0
      %p135 = por %p133, %p134
      %s136 = ssub.s32 %s18, %s25
      %p137 = scmp.eq.s32.totalorder %s136, 0
      %s139 = sadd.s32 %s138, 1
      %s140 = scalar_select %p137, %s138, %s139
      %p143 = pneg %p137
      %p144 = scmp.eq.s32.totalorder %s18, 1
      %p145 = por %p143, %p144
      %p146 = scmp.ne.s32.totalorder %s138, %s141
      %p147 = scmp.eq.s32.totalorder %s18, 0
      %p148 = por %p146, %p147
      %p149 = scmp.ne.s32.totalorder %s138, %s141
      %p150 = scmp.eq.s32.totalorder %s23, 1
      %p151 = por %p149, %p150
      %p152 = scmp.ne.s32.totalorder %s141, %s142
      %p153 = scmp.eq.s32.totalorder %s23, 0
      %p154 = por %p152, %p153
      %p155 = scmp.ne.s32.totalorder %s141, %s142
      %p156 = scmp.eq.s32.totalorder %s24, 1
      %p157 = por %p155, %p156
      %p159 = scmp.ne.s32.totalorder %s142, %s158
      %p160 = scmp.eq.s32.totalorder %s24, 0
      %p161 = por %p159, %p160
      %p162 = scmp.le.s32.totalorder 1, %s18
      %p163 = scmp.lt.s32.totalorder %s18, 3
      %p164 = pnand %p162, %p163
      %p165 = pneg %p164
      // Predicated region
      $region9: #{tpu_custom_call.1} parent=5 // pred_check
        _
      $region10: #{tpu_custom_call.1} parent=5 // pred_check_branch
        %167 = sbr.rel (%p164) target = $region12
      $region11: #{tpu_custom_call.1} parent=5 // pred_region
        %s168 = ssub.s32 %s18, 1
        // Predicated region
        $region13: #{tpu_custom_call.1} parent=11 // pred_check
          %p169 = pneg %p65
        $region14: #{tpu_custom_call.1} parent=11 // pred_check_branch
          %171 = sbr.rel (%p169) target = $region16
        $region15: #{tpu_custom_call.1} parent=11 // pred_region
          %s173 = ssub.s32 3072, 3072
          %174 = vsyncadd [#allocation6], %s173
          %s175 = sshll.u32 [#allocation5], 4
          %s176 = int_to_ptr.vmem [resolvable:$true] %s175
          %181 = dma.hbm_to_vmem [thread:$0]  %s1, 3072, %s176, [#allocation6], 192, 192, 12
        $region16: #{tpu_custom_call.1} parent=11 // pred_fallthru
          _
        // Predicated region
        $region17: #{tpu_custom_call.1} parent=11 // pred_check
          %p182 = pneg %p86
        $region18: #{tpu_custom_call.1} parent=11 // pred_check_branch
          %184 = sbr.rel (%p182) target = $region20
        $region19: #{tpu_custom_call.1} parent=11 // pred_region
          _
        $region20: #{tpu_custom_call.1} parent=11 // pred_fallthru
          _
        // Predicated region
        $region21: #{tpu_custom_call.1} parent=11 // pred_check
          %p185 = pneg %p107
        $region22: #{tpu_custom_call.1} parent=11 // pred_check_branch
          %187 = sbr.rel (%p185) target = $region24
        $region23: #{tpu_custom_call.1} parent=11 // pred_region
          _
        $region24: #{tpu_custom_call.1} parent=11 // pred_fallthru
          _
        // Predicated region
        $region25: #{tpu_custom_call.1} parent=11 // pred_check
          %p188 = pneg %p128
        $region26: #{tpu_custom_call.1} parent=11 // pred_check_branch
          %190 = sbr.rel (%p188) target = $region28
        $region27: #{tpu_custom_call.1} parent=11 // pred_region
          _
        $region28: #{tpu_custom_call.1} parent=11 // pred_fallthru
          _
      $region12: #{tpu_custom_call.1} parent=5 // pred_fallthru
        _
      %p191 = scmp.lt.s32.totalorder %s18, 2
      // Predicated region
      $region29: #{tpu_custom_call.1} parent=5 // pred_check
        %p192 = pneg %p191
      $region30: #{tpu_custom_call.1} parent=5 // pred_check_branch
        %194 = sbr.rel (%p192) target = $region32
      $region31: #{tpu_custom_call.1} parent=5 // pred_region
        // Predicated region
        $region33: #{tpu_custom_call.1} parent=31 // pred_check
          %p195 = pneg %p38
        $region34: #{tpu_custom_call.1} parent=31 // pred_check_branch
          %197 = sbr.rel (%p195) target = $region36
        $region35: #{tpu_custom_call.1} parent=31 // pred_region
          %s198 = sand.u32 %s28, 1
          %s199 = scalar_lea.sflag [#allocation3], %s198
          %s200 = sand.u32 %s28, 1
          %s201 = smul.addr %s200, 128
          %s202 = scalar_lea.vmem [#allocation2], %s201
          %s203 = smul.u32 32, %s18
          %s205 = ssub.s32 2048, 2048
          %206 = vsyncadd %s199, %s205
          %s207 = smul.addr %s203, 64
          %s208 = scalar_lea.hbm %s0, %s207
          %s209 = sshll.u32 %s202, 4
          %s210 = int_to_ptr.vmem [resolvable:$true] %s209
          %215 = dma.hbm_to_vmem [thread:$0]  %s208, 2048, %s210, %s199, 64, 64, 4
        $region36: #{tpu_custom_call.1} parent=31 // pred_fallthru
          _
      $region32: #{tpu_custom_call.1} parent=5 // pred_fallthru
        _
      %p216 = scmp.le.s32.totalorder 1, %s18
      %p217 = scmp.lt.s32.totalorder %s18, 3
      %p218 = pnand %p216, %p217
      %p219 = pneg %p218
      // Predicated region
      $region37: #{tpu_custom_call.1} parent=5 // pred_check
        _
      $region38: #{tpu_custom_call.1} parent=5 // pred_check_branch
        %221 = sbr.rel (%p218) target = $region40
      $region39: #{tpu_custom_call.1} parent=5 // pred_region
        %s222 = ssub.s32 %s18, 1
        %s223 = sand.u32 %s31, 1
        %s224 = scalar_lea.sflag [#allocation3], %s223
        %s225 = sand.u32 %s31, 1
        %s226 = smul.addr %s225, 128
        %s227 = scalar_lea.vmem [#allocation2], %s226
        // Predicated region
        $region41: #{tpu_custom_call.1} parent=39 // pred_check
          %p228 = pneg %p44
        $region42: #{tpu_custom_call.1} parent=39 // pred_check_branch
          %230 = sbr.rel (%p228) target = $region44
        $region43: #{tpu_custom_call.1} parent=39 // pred_region
          %231 = dma.done %s224, 2048
        $region44: #{tpu_custom_call.1} parent=39 // pred_fallthru
          _
        // Predicated region
        $region45: #{tpu_custom_call.1} parent=39 // pred_check
          %p232 = pneg %p65
        $region46: #{tpu_custom_call.1} parent=39 // pred_check_branch
          %234 = sbr.rel (%p232) target = $region48
        $region47: #{tpu_custom_call.1} parent=39 // pred_region
          %235 = dma.done [#allocation6], 3072
        $region48: #{tpu_custom_call.1} parent=39 // pred_fallthru
          _
        %s236 = sand.u32 %s31, 1
        %s237 = scalar_lea.sflag [#allocation3], %s236
        %s238 = sand.u32 %s31, 1
        %s239 = smul.addr %s238, 128
        %s240 = scalar_lea.vmem [#allocation2], %s239
        %p241 = pneg %p44
        %p242 = pneg %p41
        %p243 = pneg %p65
        %p244 = pneg %p62
        %p245 = pneg %p86
        %p246 = pneg %p83
        %p247 = pneg %p107
        %p248 = pneg %p104
        %p249 = pneg %p128
        %p250 = pneg %p125
        %p251 = pneg %p154
        %p252 = pneg %p151
        %s253 = sand.u32 %s141, 1
        %s254 = scalar_lea.sflag [#allocation4], %s253
        %s255 = sand.u32 %s141, 1
        %s256 = smul.addr %s255, 768
        %s257 = scalar_lea.vmem [#allocation7], %s256
        %s258 = smul.u32 32, %s23
        %s259 = smul.u32 32, %s23
        %v261 = vld [vmem:[%s227] sm:$0xf]
        %v262 = vld [vmem:[%s227 + $0x4] sm:$0xf]
        %v263 = vld [vmem:[%s227 + $0x8] sm:$0xf]
        %v264 = vld [vmem:[%s227 + $0xc] sm:$0xf]
        %v265 = vld [vmem:[%s227 + $0x10] sm:$0xf]
        %v266 = vld [vmem:[%s227 + $0x14] sm:$0xf]
        %v267 = vld [vmem:[%s227 + $0x18] sm:$0xf]
        %v268 = vld [vmem:[%s227 + $0x1c] sm:$0xf]
        %v269 = vld [vmem:[%s227 + $0x20] sm:$0xf]
        %v270 = vld [vmem:[%s227 + $0x24] sm:$0xf]
        %v271 = vld [vmem:[%s227 + $0x28] sm:$0xf]
        %v272 = vld [vmem:[%s227 + $0x2c] sm:$0xf]
        %v273 = vld [vmem:[%s227 + $0x30] sm:$0xf]
        %v274 = vld [vmem:[%s227 + $0x34] sm:$0xf]
        %v275 = vld [vmem:[%s227 + $0x38] sm:$0xf]
        %v276 = vld [vmem:[%s227 + $0x3c] sm:$0xf]
        %v277 = vld [vmem:[%s227 + $0x40] sm:$0xf]
        %v278 = vld [vmem:[%s227 + $0x44] sm:$0xf]
        %v279 = vld [vmem:[%s227 + $0x48] sm:$0xf]
        %v280 = vld [vmem:[%s227 + $0x4c] sm:$0xf]
        %v281 = vld [vmem:[%s227 + $0x50] sm:$0xf]
        %v282 = vld [vmem:[%s227 + $0x54] sm:$0xf]
        %v283 = vld [vmem:[%s227 + $0x58] sm:$0xf]
        %v284 = vld [vmem:[%s227 + $0x5c] sm:$0xf]
        %v285 = vld [vmem:[%s227 + $0x60] sm:$0xf]
        %v286 = vld [vmem:[%s227 + $0x64] sm:$0xf]
        %v287 = vld [vmem:[%s227 + $0x68] sm:$0xf]
        %v288 = vld [vmem:[%s227 + $0x6c] sm:$0xf]
        %v289 = vld [vmem:[%s227 + $0x70] sm:$0xf]
        %v290 = vld [vmem:[%s227 + $0x74] sm:$0xf]
        %v291 = vld [vmem:[%s227 + $0x78] sm:$0xf]
        %v292 = vld [vmem:[%s227 + $0x7c] sm:$0xf]
        %v293 = vld [vmem:[#allocation5] sm:$0xff]
        %v294 = vld [vmem:[#allocation5 + $0x8] sm:$0xf]
        %v295 = vld [vmem:[#allocation5 + $0xc] sm:$0xff]
        %v296 = vld [vmem:[#allocation5 + $0x14] sm:$0xf]
        %v297 = vld [vmem:[#allocation5 + $0x18] sm:$0xff]
        %v298 = vld [vmem:[#allocation5 + $0x20] sm:$0xf]
        %v299 = vld [vmem:[#allocation5 + $0x24] sm:$0xff]
        %v300 = vld [vmem:[#allocation5 + $0x2c] sm:$0xf]
        %v301 = vld [vmem:[#allocation5 + $0x30] sm:$0xff]
        %v302 = vld [vmem:[#allocation5 + $0x38] sm:$0xf]
        %v303 = vld [vmem:[#allocation5 + $0x3c] sm:$0xff]
        %v304 = vld [vmem:[#allocation5 + $0x44] sm:$0xf]
        %v305 = vld [vmem:[#allocation5 + $0x48] sm:$0xff]
        %v306 = vld [vmem:[#allocation5 + $0x50] sm:$0xf]
        %v307 = vld [vmem:[#allocation5 + $0x54] sm:$0xff]
        %v308 = vld [vmem:[#allocation5 + $0x5c] sm:$0xf]
        %v309 = vld [vmem:[#allocation5 + $0x60] sm:$0xff]
        %v310 = vld [vmem:[#allocation5 + $0x68] sm:$0xf]
        %v311 = vld [vmem:[#allocation5 + $0x6c] sm:$0xff]
        %v312 = vld [vmem:[#allocation5 + $0x74] sm:$0xf]
        %v313 = vld [vmem:[#allocation5 + $0x78] sm:$0xff]
        %v314 = vld [vmem:[#allocation5 + $0x80] sm:$0xf]
        %v315 = vld [vmem:[#allocation5 + $0x84] sm:$0xff]
        %v316 = vld [vmem:[#allocation5 + $0x8c] sm:$0xf]
        %v317 = vld [vmem:[#allocation5 + $0x90] sm:$0xff]
        %v318 = vld [vmem:[#allocation5 + $0x98] sm:$0xf]
        %v319 = vld [vmem:[#allocation5 + $0x9c] sm:$0xff]
        %v320 = vld [vmem:[#allocation5 + $0xa4] sm:$0xf]
        %v321 = vld [vmem:[#allocation5 + $0xa8] sm:$0xff]
        %v322 = vld [vmem:[#allocation5 + $0xb0] sm:$0xf]
        %v323 = vld [vmem:[#allocation5 + $0xb4] sm:$0xff]
        %v324 = vld [vmem:[#allocation5 + $0xbc] sm:$0xf]
        %v325 = vld [vmem:[%s2] sm:$0x7]
        %v327 = vlaneseq
        %v328 = vshrl.u32 %v327, 7
        %v329 = vsub.s32 0, %v328
        %v330 = vrot.slane %v325, %v329
        %v331 = vlaneseq
        %v332 = vshrl.u32 %v331, 7
        %v333 = vsub.s32 1, %v332
        %v334 = vrot.slane %v325, %v333
        %v335 = vlaneseq
        %v336 = vshrl.u32 %v335, 7
        %v337 = vsub.s32 2, %v336
        %v338 = vrot.slane %v325, %v337
        %v374 = vunpack.c.l.b16 %v261
        %v375 = vunpack.c.l.b16 %v262
        %v376 = vunpack.c.l.b16 %v263
        %v377 = vunpack.c.l.b16 %v264
        %v378 = vunpack.c.l.b16 %v265
        %v379 = vunpack.c.l.b16 %v266
        %v380 = vunpack.c.l.b16 %v267
        %v381 = vunpack.c.l.b16 %v268
        %v382 = vunpack.c.l.b16 %v269
        %v383 = vunpack.c.l.b16 %v270
        %v384 = vunpack.c.l.b16 %v271
        %v385 = vunpack.c.l.b16 %v272
        %v386 = vunpack.c.l.b16 %v273
        %v387 = vunpack.c.l.b16 %v274
        %v388 = vunpack.c.l.b16 %v275
        %v389 = vunpack.c.l.b16 %v276
        %v390 = vunpack.c.l.b16 %v277
        %v391 = vunpack.c.l.b16 %v278
        %v392 = vunpack.c.l.b16 %v279
        %v393 = vunpack.c.l.b16 %v280
        %v394 = vunpack.c.l.b16 %v281
        %v395 = vunpack.c.l.b16 %v282
        %v396 = vunpack.c.l.b16 %v283
        %v397 = vunpack.c.l.b16 %v284
        %v398 = vunpack.c.l.b16 %v285
        %v399 = vunpack.c.l.b16 %v286
        %v400 = vunpack.c.l.b16 %v287
        %v401 = vunpack.c.l.b16 %v288
        %v402 = vunpack.c.l.b16 %v289
        %v403 = vunpack.c.l.b16 %v290
        %v404 = vunpack.c.l.b16 %v291
        %v405 = vunpack.c.l.b16 %v292
        %v406 = vpack.c.b16 %v375, %v374
        %v407 = vpack.c.b16 %v377, %v376
        %v408 = vpack.c.b16 %v379, %v378
        %v409 = vpack.c.b16 %v381, %v380
        %v410 = vpack.c.b16 %v383, %v382
        %v411 = vpack.c.b16 %v385, %v384
        %v412 = vpack.c.b16 %v387, %v386
        %v413 = vpack.c.b16 %v389, %v388
        %v414 = vpack.c.b16 %v391, %v390
        %v415 = vpack.c.b16 %v393, %v392
        %v416 = vpack.c.b16 %v395, %v394
        %v417 = vpack.c.b16 %v397, %v396
        %v418 = vpack.c.b16 %v399, %v398
        %v419 = vpack.c.b16 %v401, %v400
        %v420 = vpack.c.b16 %v403, %v402
        %v421 = vpack.c.b16 %v405, %v404
        %v470 = vunpack.c.l.b16 %v293
        %v471 = vunpack.c.h.b16 %v293
        %v472 = vunpack.c.l.b16 %v294
        %v473 = vunpack.c.l.b16 %v295
        %v474 = vunpack.c.h.b16 %v295
        %v475 = vunpack.c.l.b16 %v296
        %v476 = vunpack.c.l.b16 %v297
        %v477 = vunpack.c.h.b16 %v297
        %v478 = vunpack.c.l.b16 %v298
        %v479 = vunpack.c.l.b16 %v299
        %v480 = vunpack.c.h.b16 %v299
        %v481 = vunpack.c.l.b16 %v300
        %v482 = vunpack.c.l.b16 %v301
        %v483 = vunpack.c.h.b16 %v301
        %v484 = vunpack.c.l.b16 %v302
        %v485 = vunpack.c.l.b16 %v303
        %v486 = vunpack.c.h.b16 %v303
        %v487 = vunpack.c.l.b16 %v304
        %v488 = vunpack.c.l.b16 %v305
        %v489 = vunpack.c.h.b16 %v305
        %v490 = vunpack.c.l.b16 %v306
        %v491 = vunpack.c.l.b16 %v307
        %v492 = vunpack.c.h.b16 %v307
        %v493 = vunpack.c.l.b16 %v308
        %v494 = vunpack.c.l.b16 %v309
        %v495 = vunpack.c.h.b16 %v309
        %v496 = vunpack.c.l.b16 %v310
        %v497 = vunpack.c.l.b16 %v311
        %v498 = vunpack.c.h.b16 %v311
        %v499 = vunpack.c.l.b16 %v312
        %v500 = vunpack.c.l.b16 %v313
        %v501 = vunpack.c.h.b16 %v313
        %v502 = vunpack.c.l.b16 %v314
        %v503 = vunpack.c.l.b16 %v315
        %v504 = vunpack.c.h.b16 %v315
        %v505 = vunpack.c.l.b16 %v316
        %v506 = vunpack.c.l.b16 %v317
        %v507 = vunpack.c.h.b16 %v317
        %v508 = vunpack.c.l.b16 %v318
        %v509 = vunpack.c.l.b16 %v319
        %v510 = vunpack.c.h.b16 %v319
        %v511 = vunpack.c.l.b16 %v320
        %v512 = vunpack.c.l.b16 %v321
        %v513 = vunpack.c.h.b16 %v321
        %v514 = vunpack.c.l.b16 %v322
        %v515 = vunpack.c.l.b16 %v323
        %v516 = vunpack.c.h.b16 %v323
        %v517 = vunpack.c.l.b16 %v324
        %v518 = vpack.c.b16 %v473, %v470
        %v519 = vpack.c.b16 %v474, %v471
        %v520 = vpack.c.b16 %v475, %v472
        %v521 = vpack.c.b16 %v479, %v476
        %v522 = vpack.c.b16 %v480, %v477
        %v523 = vpack.c.b16 %v481, %v478
        %v524 = vpack.c.b16 %v485, %v482
        %v525 = vpack.c.b16 %v486, %v483
        %v526 = vpack.c.b16 %v487, %v484
        %v527 = vpack.c.b16 %v491, %v488
        %v528 = vpack.c.b16 %v492, %v489
        %v529 = vpack.c.b16 %v493, %v490
        %v530 = vpack.c.b16 %v497, %v494
        %v531 = vpack.c.b16 %v498, %v495
        %v532 = vpack.c.b16 %v499, %v496
        %v533 = vpack.c.b16 %v503, %v500
        %v534 = vpack.c.b16 %v504, %v501
        %v535 = vpack.c.b16 %v505, %v502
        %v536 = vpack.c.b16 %v509, %v506
        %v537 = vpack.c.b16 %v510, %v507
        %v538 = vpack.c.b16 %v511, %v508
        %v539 = vpack.c.b16 %v515, %v512
        %v540 = vpack.c.b16 %v516, %v513
        %v541 = vpack.c.b16 %v517, %v514
        %566 = vmatprep.subr.bf16.mxu0 %v519
        %567 = vmatpush1.bf16.msra.mxu0 %v518
        %568 = vmatprep.subr.bf16.mxu0 %v522
        %569 = vmatpush1.bf16.msra.mxu0 %v521
        %570 = vmatprep.subr.bf16.mxu0 %v525
        %571 = vmatpush1.bf16.msra.mxu0 %v524
        %572 = vmatprep.subr.bf16.mxu0 %v528
        %573 = vmatpush1.bf16.msra.mxu0 %v527
        %574 = vmatprep.subr.bf16.mxu0 %v531
        %575 = vmatpush1.bf16.msra.mxu0 %v530
        %576 = vmatprep.subr.bf16.mxu0 %v534
        %577 = vmatpush1.bf16.msra.mxu0 %v533
        %578 = vmatprep.subr.bf16.mxu0 %v537
        %579 = vmatpush1.bf16.msra.mxu0 %v536
        %580 = vmatprep.subr.bf16.mxu0 %v540
        %581 = vmatpush1.bf16.msra.mxu0 %v539
        %582 = vmatprep.subr.bf16.mxu0 0
        %583 = vmatpush1.bf16.msra.mxu0 0
        %584 = vmatprep.subr.bf16.mxu0 0
        %585 = vmatpush1.bf16.msra.mxu0 0
        %586 = vmatprep.subr.bf16.mxu0 0
        %587 = vmatpush1.bf16.msra.mxu0 0
        %588 = vmatprep.subr.bf16.mxu0 0
        %589 = vmatpush1.bf16.msra.mxu0 0
        %590 = vmatprep.subr.bf16.mxu0 0
        %591 = vmatpush1.bf16.msra.mxu0 0
        %592 = vmatprep.subr.bf16.mxu0 0
        %593 = vmatpush1.bf16.msra.mxu0 0
        %594 = vmatprep.subr.bf16.mxu0 0
        %595 = vmatpush1.bf16.msra.mxu0 0
        %596 = vmatprep.subr.bf16.mxu0 0
        %597 = vmatpush1.bf16.msra.mxu0 0
        %598 = vmatprep.mubr.bf16.mxu0 0
        %599 = vmatmul.mubr.bf16.gmra.mrb[0].mxu0 %v406
        %v600 = vpop.f32.mrb[0].mxu0
        %v601 = vadd.f32 %v330, %v600
        %v602 = vpop.f32.mrb[0].mxu0
        %v603 = vadd.f32 %v334, %v602
        %v604 = vpop.f32.mrb[0].mxu0
        %v605 = vadd.f32 %v330, %v604
        %v606 = vpop.f32.mrb[0].mxu0
        %v607 = vadd.f32 %v334, %v606
        %608 = vmatprep.mubr.bf16.mxu0 0
        %609 = vmatmul.mubr.bf16.gmra.mrb[0].mxu0 %v407
        %v610 = vpop.f32.mrb[0].mxu0
        %v611 = vadd.f32 %v330, %v610
        %v612 = vpop.f32.mrb[0].mxu0
        %v613 = vadd.f32 %v334, %v612
        %v614 = vpop.f32.mrb[0].mxu0
        %v615 = vadd.f32 %v330, %v614
        %v616 = vpop.f32.mrb[0].mxu0
        %v617 = vadd.f32 %v334, %v616
        %618 = vmatprep.mubr.bf16.mxu0 0
        %619 = vmatmul.mubr.bf16.gmra.mrb[0].mxu0 %v408
        %v620 = vpop.f32.mrb[0].mxu0
        %v621 = vadd.f32 %v330, %v620
        %v622 = vpop.f32.mrb[0].mxu0
        %v623 = vadd.f32 %v334, %v622
        %v624 = vpop.f32.mrb[0].mxu0
        %v625 = vadd.f32 %v330, %v624
        %v626 = vpop.f32.mrb[0].mxu0
        %v627 = vadd.f32 %v334, %v626
        %628 = vmatprep.mubr.bf16.mxu0 0
        %629 = vmatmul.mubr.bf16.gmra.mrb[0].mxu0 %v409
        %v630 = vpop.f32.mrb[0].mxu0
        %v631 = vadd.f32 %v330, %v630
        %v632 = vpop.f32.mrb[0].mxu0
        %v633 = vadd.f32 %v334, %v632
        %v634 = vpop.f32.mrb[0].mxu0
        %v635 = vadd.f32 %v330, %v634
        %v636 = vpop.f32.mrb[0].mxu0
        %v637 = vadd.f32 %v334, %v636
        %638 = vmatprep.mubr.bf16.mxu0 0
        %639 = vmatmul.mubr.bf16.gmra.mrb[0].mxu0 %v410
        %v640 = vpop.f32.mrb[0].mxu0
        %v641 = vadd.f32 %v330, %v640
        %v642 = vpop.f32.mrb[0].mxu0
        %v643 = vadd.f32 %v334, %v642
        %v644 = vpop.f32.mrb[0].mxu0
        %v645 = vadd.f32 %v330, %v644
        %v646 = vpop.f32.mrb[0].mxu0
        %v647 = vadd.f32 %v334, %v646
        %648 = vmatprep.mubr.bf16.mxu0 0
        %649 = vmatmul.mubr.bf16.gmra.mrb[0].mxu0 %v411
        %v650 = vpop.f32.mrb[0].mxu0
        %v651 = vadd.f32 %v330, %v650
        %v652 = vpop.f32.mrb[0].mxu0
        %v653 = vadd.f32 %v334, %v652
        %v654 = vpop.f32.mrb[0].mxu0
        %v655 = vadd.f32 %v330, %v654
        %v656 = vpop.f32.mrb[0].mxu0
        %v657 = vadd.f32 %v334, %v656
        %658 = vmatprep.mubr.bf16.mxu0 0
        %659 = vmatmul.mubr.bf16.gmra.mrb[0].mxu0 %v412
        %v660 = vpop.f32.mrb[0].mxu0
        %v661 = vadd.f32 %v330, %v660
        %v662 = vpop.f32.mrb[0].mxu0
        %v663 = vadd.f32 %v334, %v662
        %v664 = vpop.f32.mrb[0].mxu0
        %v665 = vadd.f32 %v330, %v664
        %v666 = vpop.f32.mrb[0].mxu0
        %v667 = vadd.f32 %v334, %v666
        %668 = vmatprep.mubr.bf16.mxu0 0
        %669 = vmatmul.mubr.bf16.gmra.mrb[0].mxu0 %v413
        %v670 = vpop.f32.mrb[0].mxu0
        %v671 = vadd.f32 %v330, %v670
        %v672 = vpop.f32.mrb[0].mxu0
        %v673 = vadd.f32 %v334, %v672
        %v674 = vpop.f32.mrb[0].mxu0
        %v675 = vadd.f32 %v330, %v674
        %v676 = vpop.f32.mrb[0].mxu0
        %v677 = vadd.f32 %v334, %v676
        %678 = vmatprep.mubr.bf16.mxu0 0
        %679 = vmatmul.mubr.bf16.gmra.mrb[0].mxu0 %v414
        %v680 = vpop.f32.mrb[0].mxu0
        %v681 = vadd.f32 %v330, %v680
        %v682 = vpop.f32.mrb[0].mxu0
        %v683 = vadd.f32 %v334, %v682
        %v684 = vpop.f32.mrb[0].mxu0
        %v685 = vadd.f32 %v330, %v684
        %v686 = vpop.f32.mrb[0].mxu0
        %v687 = vadd.f32 %v334, %v686
        %688 = vmatprep.mubr.bf16.mxu0 0
        %689 = vmatmul.mubr.bf16.gmra.mrb[0].mxu0 %v415
        %v690 = vpop.f32.mrb[0].mxu0
        %v691 = vadd.f32 %v330, %v690
        %v692 = vpop.f32.mrb[0].mxu0
        %v693 = vadd.f32 %v334, %v692
        %v694 = vpop.f32.mrb[0].mxu0
        %v695 = vadd.f32 %v330, %v694
        %v696 = vpop.f32.mrb[0].mxu0
        %v697 = vadd.f32 %v334, %v696
        %698 = vmatprep.mubr.bf16.mxu0 0
        %699 = vmatmul.mubr.bf16.gmra.mrb[0].mxu0 %v416
        %v700 = vpop.f32.mrb[0].mxu0
        %v701 = vadd.f32 %v330, %v700
        %v702 = vpop.f32.mrb[0].mxu0
        %v703 = vadd.f32 %v334, %v702
        %v704 = vpop.f32.mrb[0].mxu0
        %v705 = vadd.f32 %v330, %v704
        %v706 = vpop.f32.mrb[0].mxu0
        %v707 = vadd.f32 %v334, %v706
        %708 = vmatprep.mubr.bf16.mxu0 0
        %709 = vmatmul.mubr.bf16.gmra.mrb[0].mxu0 %v417
        %v710 = vpop.f32.mrb[0].mxu0
        %v711 = vadd.f32 %v330, %v710
        %v712 = vpop.f32.mrb[0].mxu0
        %v713 = vadd.f32 %v334, %v712
        %v714 = vpop.f32.mrb[0].mxu0
        %v715 = vadd.f32 %v330, %v714
        %v716 = vpop.f32.mrb[0].mxu0
        %v717 = vadd.f32 %v334, %v716
        %718 = vmatprep.mubr.bf16.mxu0 0
        %719 = vmatmul.mubr.bf16.gmra.mrb[0].mxu0 %v418
        %v720 = vpop.f32.mrb[0].mxu0
        %v721 = vadd.f32 %v330, %v720
        %v722 = vpop.f32.mrb[0].mxu0
        %v723 = vadd.f32 %v334, %v722
        %v724 = vpop.f32.mrb[0].mxu0
        %v725 = vadd.f32 %v330, %v724
        %v726 = vpop.f32.mrb[0].mxu0
        %v727 = vadd.f32 %v334, %v726
        %728 = vmatprep.mubr.bf16.mxu0 0
        %729 = vmatmul.mubr.bf16.gmra.mrb[0].mxu0 %v419
        %v730 = vpop.f32.mrb[0].mxu0
        %v731 = vadd.f32 %v330, %v730
        %v732 = vpop.f32.mrb[0].mxu0
        %v733 = vadd.f32 %v334, %v732
        %v734 = vpop.f32.mrb[0].mxu0
        %v735 = vadd.f32 %v330, %v734
        %v736 = vpop.f32.mrb[0].mxu0
        %v737 = vadd.f32 %v334, %v736
        %738 = vmatprep.mubr.bf16.mxu0 0
        %739 = vmatmul.mubr.bf16.gmra.mrb[0].mxu0 %v420
        %v740 = vpop.f32.mrb[0].mxu0
        %v741 = vadd.f32 %v330, %v740
        %v742 = vpop.f32.mrb[0].mxu0
        %v743 = vadd.f32 %v334, %v742
        %v744 = vpop.f32.mrb[0].mxu0
        %v745 = vadd.f32 %v330, %v744
        %v746 = vpop.f32.mrb[0].mxu0
        %v747 = vadd.f32 %v334, %v746
        %748 = vmatprep.mubr.bf16.mxu0 0
        %749 = vmatmul.mubr.bf16.gmra.mrb[0].mxu0 %v421
        %v750 = vpop.f32.mrb[0].mxu0
        %v751 = vadd.f32 %v330, %v750
        %v752 = vpop.f32.mrb[0].mxu0
        %v753 = vadd.f32 %v334, %v752
        %v754 = vpop.f32.mrb[0].mxu0
        %v755 = vadd.f32 %v330, %v754
        %v756 = vpop.f32.mrb[0].mxu0
        %v757 = vadd.f32 %v334, %v756
        %758 = vdwg.mxu0
        %759 = vmatprep.subr.bf16.mxu0 0
        %760 = vmatpush1.bf16.msra.mxu0 %v520
        %761 = vmatprep.subr.bf16.mxu0 0
        %762 = vmatpush1.bf16.msra.mxu0 %v523
        %763 = vmatprep.subr.bf16.mxu0 0
        %764 = vmatpush1.bf16.msra.mxu0 %v526
        %765 = vmatprep.subr.bf16.mxu0 0
        %766 = vmatpush1.bf16.msra.mxu0 %v529
        %767 = vmatprep.subr.bf16.mxu0 0
        %768 = vmatpush1.bf16.msra.mxu0 %v532
        %769 = vmatprep.subr.bf16.mxu0 0
        %770 = vmatpush1.bf16.msra.mxu0 %v535
        %771 = vmatprep.subr.bf16.mxu0 0
        %772 = vmatpush1.bf16.msra.mxu0 %v538
        %773 = vmatprep.subr.bf16.mxu0 0
        %774 = vmatpush1.bf16.msra.mxu0 %v541
        %775 = vmatprep.subr.bf16.mxu0 0
        %776 = vmatpush1.bf16.msra.mxu0 0
        %777 = vmatprep.subr.bf16.mxu0 0
        %778 = vmatpush1.bf16.msra.mxu0 0
        %779 = vmatprep.subr.bf16.mxu0 0
        %780 = vmatpush1.bf16.msra.mxu0 0
        %781 = vmatprep.subr.bf16.mxu0 0
        %782 = vmatpush1.bf16.msra.mxu0 0
        %783 = vmatprep.subr.bf16.mxu0 0
        %784 = vmatpush1.bf16.msra.mxu0 0
        %785 = vmatprep.subr.bf16.mxu0 0
        %786 = vmatpush1.bf16.msra.mxu0 0
        %787 = vmatprep.subr.bf16.mxu0 0
        %788 = vmatpush1.bf16.msra.mxu0 0
        %789 = vmatprep.subr.bf16.mxu0 0
        %790 = vmatpush1.bf16.msra.mxu0 0
        %791 = vmatprep.mubr.bf16.mxu0 0
        %792 = vmatmul.mubr.bf16.gmra.mrb[0].mxu0 %v406
        %v793 = vpop.f32.mrb[0].mxu0
        %v794 = vadd.f32 %v338, %v793
        %v795 = vpop.f32.mrb[0].mxu0
        %v796 = vpop.f32.mrb[0].mxu0
        %v797 = vadd.f32 %v338, %v796
        %v798 = vpop.f32.mrb[0].mxu0
        %799 = vmatprep.mubr.bf16.mxu0 0
        %800 = vmatmul.mubr.bf16.gmra.mrb[0].mxu0 %v407
        %v801 = vpop.f32.mrb[0].mxu0
        %v802 = vadd.f32 %v338, %v801
        %v803 = vpop.f32.mrb[0].mxu0
        %v804 = vpop.f32.mrb[0].mxu0
        %v805 = vadd.f32 %v338, %v804
        %v806 = vpop.f32.mrb[0].mxu0
        %807 = vmatprep.mubr.bf16.mxu0 0
        %808 = vmatmul.mubr.bf16.gmra.mrb[0].mxu0 %v408
        %v809 = vpop.f32.mrb[0].mxu0
        %v810 = vadd.f32 %v338, %v809
        %v811 = vpop.f32.mrb[0].mxu0
        %v812 = vpop.f32.mrb[0].mxu0
        %v813 = vadd.f32 %v338, %v812
        %v814 = vpop.f32.mrb[0].mxu0
        %815 = vmatprep.mubr.bf16.mxu0 0
        %816 = vmatmul.mubr.bf16.gmra.mrb[0].mxu0 %v409
        %v817 = vpop.f32.mrb[0].mxu0
        %v818 = vadd.f32 %v338, %v817
        %v819 = vpop.f32.mrb[0].mxu0
        %v820 = vpop.f32.mrb[0].mxu0
        %v821 = vadd.f32 %v338, %v820
        %v822 = vpop.f32.mrb[0].mxu0
        %823 = vmatprep.mubr.bf16.mxu0 0
        %824 = vmatmul.mubr.bf16.gmra.mrb[0].mxu0 %v410
        %v825 = vpop.f32.mrb[0].mxu0
        %v826 = vadd.f32 %v338, %v825
        %v827 = vpop.f32.mrb[0].mxu0
        %v828 = vpop.f32.mrb[0].mxu0
        %v829 = vadd.f32 %v338, %v828
        %v830 = vpop.f32.mrb[0].mxu0
        %831 = vmatprep.mubr.bf16.mxu0 0
        %832 = vmatmul.mubr.bf16.gmra.mrb[0].mxu0 %v411
        %v833 = vpop.f32.mrb[0].mxu0
        %v834 = vadd.f32 %v338, %v833
        %v835 = vpop.f32.mrb[0].mxu0
        %v836 = vpop.f32.mrb[0].mxu0
        %v837 = vadd.f32 %v338, %v836
        %v838 = vpop.f32.mrb[0].mxu0
        %839 = vmatprep.mubr.bf16.mxu0 0
        %840 = vmatmul.mubr.bf16.gmra.mrb[0].mxu0 %v412
        %v841 = vpop.f32.mrb[0].mxu0
        %v842 = vadd.f32 %v338, %v841
        %v843 = vpop.f32.mrb[0].mxu0
        %v844 = vpop.f32.mrb[0].mxu0
        %v845 = vadd.f32 %v338, %v844
        %v846 = vpop.f32.mrb[0].mxu0
        %847 = vmatprep.mubr.bf16.mxu0 0
        %848 = vmatmul.mubr.bf16.gmra.mrb[0].mxu0 %v413
        %v849 = vpop.f32.mrb[0].mxu0
        %v850 = vadd.f32 %v338, %v849
        %v851 = vpop.f32.mrb[0].mxu0
        %v852 = vpop.f32.mrb[0].mxu0
        %v853 = vadd.f32 %v338, %v852
        %v854 = vpop.f32.mrb[0].mxu0
        %855 = vmatprep.mubr.bf16.mxu0 0
        %856 = vmatmul.mubr.bf16.gmra.mrb[0].mxu0 %v414
        %v857 = vpop.f32.mrb[0].mxu0
        %v858 = vadd.f32 %v338, %v857
        %v859 = vpop.f32.mrb[0].mxu0
        %v860 = vpop.f32.mrb[0].mxu0
        %v861 = vadd.f32 %v338, %v860
        %v862 = vpop.f32.mrb[0].mxu0
        %863 = vmatprep.mubr.bf16.mxu0 0
        %864 = vmatmul.mubr.bf16.gmra.mrb[0].mxu0 %v415
        %v865 = vpop.f32.mrb[0].mxu0
        %v866 = vadd.f32 %v338, %v865
        %v867 = vpop.f32.mrb[0].mxu0
        %v868 = vpop.f32.mrb[0].mxu0
        %v869 = vadd.f32 %v338, %v868
        %v870 = vpop.f32.mrb[0].mxu0
        %871 = vmatprep.mubr.bf16.mxu0 0
        %872 = vmatmul.mubr.bf16.gmra.mrb[0].mxu0 %v416
        %v873 = vpop.f32.mrb[0].mxu0
        %v874 = vadd.f32 %v338, %v873
        %v875 = vpop.f32.mrb[0].mxu0
        %v876 = vpop.f32.mrb[0].mxu0
        %v877 = vadd.f32 %v338, %v876
        %v878 = vpop.f32.mrb[0].mxu0
        %879 = vmatprep.mubr.bf16.mxu0 0
        %880 = vmatmul.mubr.bf16.gmra.mrb[0].mxu0 %v417
        %v881 = vpop.f32.mrb[0].mxu0
        %v882 = vadd.f32 %v338, %v881
        %v883 = vpop.f32.mrb[0].mxu0
        %v884 = vpop.f32.mrb[0].mxu0
        %v885 = vadd.f32 %v338, %v884
        %v886 = vpop.f32.mrb[0].mxu0
        %887 = vmatprep.mubr.bf16.mxu0 0
        %888 = vmatmul.mubr.bf16.gmra.mrb[0].mxu0 %v418
        %v889 = vpop.f32.mrb[0].mxu0
        %v890 = vadd.f32 %v338, %v889
        %v891 = vpop.f32.mrb[0].mxu0
        %v892 = vpop.f32.mrb[0].mxu0
        %v893 = vadd.f32 %v338, %v892
        %v894 = vpop.f32.mrb[0].mxu0
        %895 = vmatprep.mubr.bf16.mxu0 0
        %896 = vmatmul.mubr.bf16.gmra.mrb[0].mxu0 %v419
        %v897 = vpop.f32.mrb[0].mxu0
        %v898 = vadd.f32 %v338, %v897
        %v899 = vpop.f32.mrb[0].mxu0
        %v900 = vpop.f32.mrb[0].mxu0
        %v901 = vadd.f32 %v338, %v900
        %v902 = vpop.f32.mrb[0].mxu0
        %903 = vmatprep.mubr.bf16.mxu0 0
        %904 = vmatmul.mubr.bf16.gmra.mrb[0].mxu0 %v420
        %v905 = vpop.f32.mrb[0].mxu0
        %v906 = vadd.f32 %v338, %v905
        %v907 = vpop.f32.mrb[0].mxu0
        %v908 = vpop.f32.mrb[0].mxu0
        %v909 = vadd.f32 %v338, %v908
        %v910 = vpop.f32.mrb[0].mxu0
        %911 = vmatprep.mubr.bf16.mxu0 0
        %912 = vmatmul.mubr.bf16.gmra.mrb[0].mxu0 %v421
        %v913 = vpop.f32.mrb[0].mxu0
        %v914 = vadd.f32 %v338, %v913
        %v915 = vpop.f32.mrb[0].mxu0
        %v916 = vpop.f32.mrb[0].mxu0
        %v917 = vadd.f32 %v338, %v916
        %v918 = vpop.f32.mrb[0].mxu0
        %919 = vdwg.mxu0
        %v920 = vld [vmem:[%s3] sm:$0xf]
        %v921 = vld [vmem:[%s3 + $0x4] sm:$0xf]
        %v922 = vld [vmem:[%s3 + $0x8] sm:$0xf]
        %v923 = vld [vmem:[%s3 + $0xc] sm:$0xf]
        %v924 = vld [vmem:[%s3 + $0x10] sm:$0xf]
        %v925 = vld [vmem:[%s3 + $0x14] sm:$0xf]
        %v926 = vld [vmem:[%s3 + $0x18] sm:$0xf]
        %v927 = vld [vmem:[%s3 + $0x1c] sm:$0xf]
        %v928 = vld [vmem:[%s3 + $0x20] sm:$0xf]
        %v929 = vld [vmem:[%s3 + $0x24] sm:$0xf]
        %v930 = vld [vmem:[%s3 + $0x28] sm:$0xf]
        %v931 = vld [vmem:[%s3 + $0x2c] sm:$0xf]
        %v932 = vld [vmem:[%s3 + $0x30] sm:$0xf]
        %v933 = vld [vmem:[%s3 + $0x34] sm:$0xf]
        %v934 = vld [vmem:[%s3 + $0x38] sm:$0xf]
        %v935 = vld [vmem:[%s3 + $0x3c] sm:$0xf]
        %v952 = vunpack.c.l.b16 %v920
        %v953 = vunpack.c.l.b16 %v921
        %v954 = vunpack.c.l.b16 %v922
        %v955 = vunpack.c.l.b16 %v923
        %v956 = vunpack.c.l.b16 %v924
        %v957 = vunpack.c.l.b16 %v925
        %v958 = vunpack.c.l.b16 %v926
        %v959 = vunpack.c.l.b16 %v927
        %v960 = vunpack.c.l.b16 %v928
        %v961 = vunpack.c.l.b16 %v929
        %v962 = vunpack.c.l.b16 %v930
        %v963 = vunpack.c.l.b16 %v931
        %v964 = vunpack.c.l.b16 %v932
        %v965 = vunpack.c.l.b16 %v933
        %v966 = vunpack.c.l.b16 %v934
        %v967 = vunpack.c.l.b16 %v935
        %v968 = vpack.c.b16 %v953, %v952
        %v969 = vpack.c.b16 %v955, %v954
        %v970 = vpack.c.b16 %v957, %v956
        %v971 = vpack.c.b16 %v959, %v958
        %v972 = vpack.c.b16 %v961, %v960
        %v973 = vpack.c.b16 %v963, %v962
        %v974 = vpack.c.b16 %v965, %v964
        %v975 = vpack.c.b16 %v967, %v966
        %984 = vmatprep.subr.bf16.mxu0 0
        %985 = vmatpush1.bf16.msra.mxu0 %v968
        %986 = vmatprep.subr.bf16.mxu0 0
        %987 = vmatpush1.bf16.msra.mxu0 %v969
        %988 = vmatprep.subr.bf16.mxu0 0
        %989 = vmatpush1.bf16.msra.mxu0 %v970
        %990 = vmatprep.subr.bf16.mxu0 0
        %991 = vmatpush1.bf16.msra.mxu0 %v971
        %992 = vmatprep.subr.bf16.mxu0 0
        %993 = vmatpush1.bf16.msra.mxu0 %v972
        %994 = vmatprep.subr.bf16.mxu0 0
        %995 = vmatpush1.bf16.msra.mxu0 %v973
        %996 = vmatprep.subr.bf16.mxu0 0
        %997 = vmatpush1.bf16.msra.mxu0 %v974
        %998 = vmatprep.subr.bf16.mxu0 0
        %999 = vmatpush1.bf16.msra.mxu0 %v975
        %1000 = vmatprep.subr.bf16.mxu0 0
        %1001 = vmatpush1.bf16.msra.mxu0 0
        %1002 = vmatprep.subr.bf16.mxu0 0
        %1003 = vmatpush1.bf16.msra.mxu0 0
        %1004 = vmatprep.subr.bf16.mxu0 0
        %1005 = vmatpush1.bf16.msra.mxu0 0
        %1006 = vmatprep.subr.bf16.mxu0 0
        %1007 = vmatpush1.bf16.msra.mxu0 0
        %1008 = vmatprep.subr.bf16.mxu0 0
        %1009 = vmatpush1.bf16.msra.mxu0 0
        %1010 = vmatprep.subr.bf16.mxu0 0
        %1011 = vmatpush1.bf16.msra.mxu0 0
        %1012 = vmatprep.subr.bf16.mxu0 0
        %1013 = vmatpush1.bf16.msra.mxu0 0
        %1014 = vmatprep.subr.bf16.mxu0 0
        %1015 = vmatpush1.bf16.msra.mxu0 0
        %1016 = vmatprep.mubr.bf16.mxu0 0
        %1017 = vmatmul.mubr.bf16.gmra.mrb[0].mxu0 %v406
        %v1018 = vpop.f32.mrb[0].mxu0
        %v1019 = vadd.f32 0.0, %v1018
        %v1020 = vpop.f32.mrb[0].mxu0
        %v1021 = vpop.f32.mrb[0].mxu0
        %v1022 = vadd.f32 0.0, %v1021
        %v1023 = vpop.f32.mrb[0].mxu0
        %1024 = vmatprep.mubr.bf16.mxu0 0
        %1025 = vmatmul.mubr.bf16.gmra.mrb[0].mxu0 %v407
        %v1026 = vpop.f32.mrb[0].mxu0
        %v1027 = vadd.f32 0.0, %v1026
        %v1028 = vpop.f32.mrb[0].mxu0
        %v1029 = vpop.f32.mrb[0].mxu0
        %v1030 = vadd.f32 0.0, %v1029
        %v1031 = vpop.f32.mrb[0].mxu0
        %1032 = vmatprep.mubr.bf16.mxu0 0
        %1033 = vmatmul.mubr.bf16.gmra.mrb[0].mxu0 %v408
        %v1034 = vpop.f32.mrb[0].mxu0
        %v1035 = vadd.f32 0.0, %v1034
        %v1036 = vpop.f32.mrb[0].mxu0
        %v1037 = vpop.f32.mrb[0].mxu0
        %v1038 = vadd.f32 0.0, %v1037
        %v1039 = vpop.f32.mrb[0].mxu0
        %1040 = vmatprep.mubr.bf16.mxu0 0
        %1041 = vmatmul.mubr.bf16.gmra.mrb[0].mxu0 %v409
        %v1042 = vpop.f32.mrb[0].mxu0
        %v1043 = vadd.f32 0.0, %v1042
        %v1044 = vpop.f32.mrb[0].mxu0
        %v1045 = vpop.f32.mrb[0].mxu0
        %v1046 = vadd.f32 0.0, %v1045
        %v1047 = vpop.f32.mrb[0].mxu0
        %1048 = vmatprep.mubr.bf16.mxu0 0
        %1049 = vmatmul.mubr.bf16.gmra.mrb[0].mxu0 %v410
        %v1050 = vpop.f32.mrb[0].mxu0
        %v1051 = vadd.f32 0.0, %v1050
        %v1052 = vpop.f32.mrb[0].mxu0
        %v1053 = vpop.f32.mrb[0].mxu0
        %v1054 = vadd.f32 0.0, %v1053
        %v1055 = vpop.f32.mrb[0].mxu0
        %1056 = vmatprep.mubr.bf16.mxu0 0
        %1057 = vmatmul.mubr.bf16.gmra.mrb[0].mxu0 %v411
        %v1058 = vpop.f32.mrb[0].mxu0
        %v1059 = vadd.f32 0.0, %v1058
        %v1060 = vpop.f32.mrb[0].mxu0
        %v1061 = vpop.f32.mrb[0].mxu0
        %v1062 = vadd.f32 0.0, %v1061
        %v1063 = vpop.f32.mrb[0].mxu0
        %1064 = vmatprep.mubr.bf16.mxu0 0
        %1065 = vmatmul.mubr.bf16.gmra.mrb[0].mxu0 %v412
        %v1066 = vpop.f32.mrb[0].mxu0
        %v1067 = vadd.f32 0.0, %v1066
        %v1068 = vpop.f32.mrb[0].mxu0
        %v1069 = vpop.f32.mrb[0].mxu0
        %v1070 = vadd.f32 0.0, %v1069
        %v1071 = vpop.f32.mrb[0].mxu0
        %1072 = vmatprep.mubr.bf16.mxu0 0
        %1073 = vmatmul.mubr.bf16.gmra.mrb[0].mxu0 %v413
        %v1074 = vpop.f32.mrb[0].mxu0
        %v1075 = vadd.f32 0.0, %v1074
        %v1076 = vpop.f32.mrb[0].mxu0
        %v1077 = vpop.f32.mrb[0].mxu0
        %v1078 = vadd.f32 0.0, %v1077
        %v1079 = vpop.f32.mrb[0].mxu0
        %1080 = vmatprep.mubr.bf16.mxu0 0
        %1081 = vmatmul.mubr.bf16.gmra.mrb[0].mxu0 %v414
        %v1082 = vpop.f32.mrb[0].mxu0
        %v1083 = vadd.f32 0.0, %v1082
        %v1084 = vpop.f32.mrb[0].mxu0
        %v1085 = vpop.f32.mrb[0].mxu0
        %v1086 = vadd.f32 0.0, %v1085
        %v1087 = vpop.f32.mrb[0].mxu0
        %1088 = vmatprep.mubr.bf16.mxu0 0
        %1089 = vmatmul.mubr.bf16.gmra.mrb[0].mxu0 %v415
        %v1090 = vpop.f32.mrb[0].mxu0
        %v1091 = vadd.f32 0.0, %v1090
        %v1092 = vpop.f32.mrb[0].mxu0
        %v1093 = vpop.f32.mrb[0].mxu0
        %v1094 = vadd.f32 0.0, %v1093
        %v1095 = vpop.f32.mrb[0].mxu0
        %1096 = vmatprep.mubr.bf16.mxu0 0
        %1097 = vmatmul.mubr.bf16.gmra.mrb[0].mxu0 %v416
        %v1098 = vpop.f32.mrb[0].mxu0
        %v1099 = vadd.f32 0.0, %v1098
        %v1100 = vpop.f32.mrb[0].mxu0
        %v1101 = vpop.f32.mrb[0].mxu0
        %v1102 = vadd.f32 0.0, %v1101
        %v1103 = vpop.f32.mrb[0].mxu0
        %1104 = vmatprep.mubr.bf16.mxu0 0
        %1105 = vmatmul.mubr.bf16.gmra.mrb[0].mxu0 %v417
        %v1106 = vpop.f32.mrb[0].mxu0
        %v1107 = vadd.f32 0.0, %v1106
        %v1108 = vpop.f32.mrb[0].mxu0
        %v1109 = vpop.f32.mrb[0].mxu0
        %v1110 = vadd.f32 0.0, %v1109
        %v1111 = vpop.f32.mrb[0].mxu0
        %1112 = vmatprep.mubr.bf16.mxu0 0
        %1113 = vmatmul.mubr.bf16.gmra.mrb[0].mxu0 %v418
        %v1114 = vpop.f32.mrb[0].mxu0
        %v1115 = vadd.f32 0.0, %v1114
        %v1116 = vpop.f32.mrb[0].mxu0
        %v1117 = vpop.f32.mrb[0].mxu0
        %v1118 = vadd.f32 0.0, %v1117
        %v1119 = vpop.f32.mrb[0].mxu0
        %1120 = vmatprep.mubr.bf16.mxu0 0
        %1121 = vmatmul.mubr.bf16.gmra.mrb[0].mxu0 %v419
        %v1122 = vpop.f32.mrb[0].mxu0
        %v1123 = vadd.f32 0.0, %v1122
        %v1124 = vpop.f32.mrb[0].mxu0
        %v1125 = vpop.f32.mrb[0].mxu0
        %v1126 = vadd.f32 0.0, %v1125
        %v1127 = vpop.f32.mrb[0].mxu0
        %1128 = vmatprep.mubr.bf16.mxu0 0
        %1129 = vmatmul.mubr.bf16.gmra.mrb[0].mxu0 %v420
        %v1130 = vpop.f32.mrb[0].mxu0
        %v1131 = vadd.f32 0.0, %v1130
        %v1132 = vpop.f32.mrb[0].mxu0
        %v1133 = vpop.f32.mrb[0].mxu0
        %v1134 = vadd.f32 0.0, %v1133
        %v1135 = vpop.f32.mrb[0].mxu0
        %1136 = vmatprep.mubr.bf16.mxu0 0
        %1137 = vmatmul.mubr.bf16.gmra.mrb[0].mxu0 %v421
        %v1138 = vpop.f32.mrb[0].mxu0
        %v1139 = vadd.f32 0.0, %v1138
        %v1140 = vpop.f32.mrb[0].mxu0
        %v1141 = vpop.f32.mrb[0].mxu0
        %v1142 = vadd.f32 0.0, %v1141
        %v1143 = vpop.f32.mrb[0].mxu0
        %1144 = vdwg.mxu0
        %v1145 = vpack.c.bf16 %v1022, %v1019
        %v1146 = vpack.c.bf16 %v1030, %v1027
        %v1147 = vpack.c.bf16 %v1038, %v1035
        %v1148 = vpack.c.bf16 %v1046, %v1043
        %v1149 = vpack.c.bf16 %v1054, %v1051
        %v1150 = vpack.c.bf16 %v1062, %v1059
        %v1151 = vpack.c.bf16 %v1070, %v1067
        %v1152 = vpack.c.bf16 %v1078, %v1075
        %v1153 = vpack.c.bf16 %v1086, %v1083
        %v1154 = vpack.c.bf16 %v1094, %v1091
        %v1155 = vpack.c.bf16 %v1102, %v1099
        %v1156 = vpack.c.bf16 %v1110, %v1107
        %v1157 = vpack.c.bf16 %v1118, %v1115
        %v1158 = vpack.c.bf16 %v1126, %v1123
        %v1159 = vpack.c.bf16 %v1134, %v1131
        %v1160 = vpack.c.bf16 %v1142, %v1139
        %v1161 = vld [vmem:[%s4] sm:$0xff]
        %v1163 = vunpack.c.l.b16 %v1161
        %v1164 = vunpack.c.h.b16 %v1161
        %v1165 = vpack.c.b16 %v1163, %v1163
        %v1166 = vpack.c.b16 %v1164, %v1164
        %vm1167 = vcmask 64512
        %v1169 = vsel %vm1167, %v1145, 0
        %v1172 = vsel %vm1167, %v1146, 0
        %v1175 = vsel %vm1167, %v1147, 0
        %v1178 = vsel %vm1167, %v1148, 0
        %v1181 = vsel %vm1167, %v1149, 0
        %v1184 = vsel %vm1167, %v1150, 0
        %v1187 = vsel %vm1167, %v1151, 0
        %v1190 = vsel %vm1167, %v1152, 0
        %v1193 = vsel %vm1167, %v1153, 0
        %v1196 = vsel %vm1167, %v1154, 0
        %v1199 = vsel %vm1167, %v1155, 0
        %v1202 = vsel %vm1167, %v1156, 0
        %v1205 = vsel %vm1167, %v1157, 0
        %v1208 = vsel %vm1167, %v1158, 0
        %v1211 = vsel %vm1167, %v1159, 0
        %v1214 = vsel %vm1167, %v1160, 0
        %vm1216 = vcmask 1043456
        %v1218 = vsel %vm1216, %v1165, 0
        %v1221 = vsel %vm1216, %v1166, 0
        %1223 = vmatprep.subr.bf16.mxu0 %v1221
        %1224 = vmatpush1.bf16.msra.mxu0 %v1218
        %1225 = vmatprep.subr.bf16.mxu0 0
        %1226 = vmatpush1.bf16.msra.mxu0 0
        %1227 = vmatprep.subr.bf16.mxu0 0
        %1228 = vmatpush1.bf16.msra.mxu0 0
        %1229 = vmatprep.subr.bf16.mxu0 0
        %1230 = vmatpush1.bf16.msra.mxu0 0
        %1231 = vmatprep.subr.bf16.mxu0 0
        %1232 = vmatpush1.bf16.msra.mxu0 0
        %1233 = vmatprep.subr.bf16.mxu0 0
        %1234 = vmatpush1.bf16.msra.mxu0 0
        %1235 = vmatprep.subr.bf16.mxu0 0
        %1236 = vmatpush1.bf16.msra.mxu0 0
        %1237 = vmatprep.subr.bf16.mxu0 0
        %1238 = vmatpush1.bf16.msra.mxu0 0
        %1239 = vmatprep.subr.bf16.mxu0 0
        %1240 = vmatpush1.bf16.msra.mxu0 0
        %1241 = vmatprep.subr.bf16.mxu0 0
        %1242 = vmatpush1.bf16.msra.mxu0 0
        %1243 = vmatprep.subr.bf16.mxu0 0
        %1244 = vmatpush1.bf16.msra.mxu0 0
        %1245 = vmatprep.subr.bf16.mxu0 0
        %1246 = vmatpush1.bf16.msra.mxu0 0
        %1247 = vmatprep.subr.bf16.mxu0 0
        %1248 = vmatpush1.bf16.msra.mxu0 0
        %1249 = vmatprep.subr.bf16.mxu0 0
        %1250 = vmatpush1.bf16.msra.mxu0 0
        %1251 = vmatprep.subr.bf16.mxu0 0
        %1252 = vmatpush1.bf16.msra.mxu0 0
        %1253 = vmatprep.subr.bf16.mxu0 0
        %1254 = vmatpush1.bf16.msra.mxu0 0
        %1255 = vmatprep.mubr.bf16.mxu0 0
        %1256 = vmatmul.mubr.bf16.gmra.mrb[0].mxu0 %v1169
        %v1257 = vpop.f32.mrb[0].mxu0
        %v1258 = vadd.f32 0.0, %v1257
        %v1259 = vpop.f32.mrb[0].mxu0
        %v1260 = vadd.f32 0.0, %v1259
        %v1261 = vpop.f32.mrb[0].mxu0
        %v1262 = vadd.f32 0.0, %v1261
        %v1263 = vpop.f32.mrb[0].mxu0
        %v1264 = vadd.f32 0.0, %v1263
        %1265 = vmatprep.mubr.bf16.mxu0 0
        %1266 = vmatmul.mubr.bf16.gmra.mrb[0].mxu0 %v1172
        %v1267 = vpop.f32.mrb[0].mxu0
        %v1268 = vadd.f32 0.0, %v1267
        %v1269 = vpop.f32.mrb[0].mxu0
        %v1270 = vadd.f32 0.0, %v1269
        %v1271 = vpop.f32.mrb[0].mxu0
        %v1272 = vadd.f32 0.0, %v1271
        %v1273 = vpop.f32.mrb[0].mxu0
        %v1274 = vadd.f32 0.0, %v1273
        %1275 = vmatprep.mubr.bf16.mxu0 0
        %1276 = vmatmul.mubr.bf16.gmra.mrb[0].mxu0 %v1175
        %v1277 = vpop.f32.mrb[0].mxu0
        %v1278 = vadd.f32 0.0, %v1277
        %v1279 = vpop.f32.mrb[0].mxu0
        %v1280 = vadd.f32 0.0, %v1279
        %v1281 = vpop.f32.mrb[0].mxu0
        %v1282 = vadd.f32 0.0, %v1281
        %v1283 = vpop.f32.mrb[0].mxu0
        %v1284 = vadd.f32 0.0, %v1283
        %1285 = vmatprep.mubr.bf16.mxu0 0
        %1286 = vmatmul.mubr.bf16.gmra.mrb[0].mxu0 %v1178
        %v1287 = vpop.f32.mrb[0].mxu0
        %v1288 = vadd.f32 0.0, %v1287
        %v1289 = vpop.f32.mrb[0].mxu0
        %v1290 = vadd.f32 0.0, %v1289
        %v1291 = vpop.f32.mrb[0].mxu0
        %v1292 = vadd.f32 0.0, %v1291
        %v1293 = vpop.f32.mrb[0].mxu0
        %v1294 = vadd.f32 0.0, %v1293
        %1295 = vmatprep.mubr.bf16.mxu0 0
        %1296 = vmatmul.mubr.bf16.gmra.mrb[0].mxu0 %v1181
        %v1297 = vpop.f32.mrb[0].mxu0
        %v1298 = vadd.f32 0.0, %v1297
        %v1299 = vpop.f32.mrb[0].mxu0
        %v1300 = vadd.f32 0.0, %v1299
        %v1301 = vpop.f32.mrb[0].mxu0
        %v1302 = vadd.f32 0.0, %v1301
        %v1303 = vpop.f32.mrb[0].mxu0
        %v1304 = vadd.f32 0.0, %v1303
        %1305 = vmatprep.mubr.bf16.mxu0 0
        %1306 = vmatmul.mubr.bf16.gmra.mrb[0].mxu0 %v1184
        %v1307 = vpop.f32.mrb[0].mxu0
        %v1308 = vadd.f32 0.0, %v1307
        %v1309 = vpop.f32.mrb[0].mxu0
        %v1310 = vadd.f32 0.0, %v1309
        %v1311 = vpop.f32.mrb[0].mxu0
        %v1312 = vadd.f32 0.0, %v1311
        %v1313 = vpop.f32.mrb[0].mxu0
        %v1314 = vadd.f32 0.0, %v1313
        %1315 = vmatprep.mubr.bf16.mxu0 0
        %1316 = vmatmul.mubr.bf16.gmra.mrb[0].mxu0 %v1187
        %v1317 = vpop.f32.mrb[0].mxu0
        %v1318 = vadd.f32 0.0, %v1317
        %v1319 = vpop.f32.mrb[0].mxu0
        %v1320 = vadd.f32 0.0, %v1319
        %v1321 = vpop.f32.mrb[0].mxu0
        %v1322 = vadd.f32 0.0, %v1321
        %v1323 = vpop.f32.mrb[0].mxu0
        %v1324 = vadd.f32 0.0, %v1323
        %1325 = vmatprep.mubr.bf16.mxu0 0
        %1326 = vmatmul.mubr.bf16.gmra.mrb[0].mxu0 %v1190
        %v1327 = vpop.f32.mrb[0].mxu0
        %v1328 = vadd.f32 0.0, %v1327
        %v1329 = vpop.f32.mrb[0].mxu0
        %v1330 = vadd.f32 0.0, %v1329
        %v1331 = vpop.f32.mrb[0].mxu0
        %v1332 = vadd.f32 0.0, %v1331
        %v1333 = vpop.f32.mrb[0].mxu0
        %v1334 = vadd.f32 0.0, %v1333
        %1335 = vmatprep.mubr.bf16.mxu0 0
        %1336 = vmatmul.mubr.bf16.gmra.mrb[0].mxu0 %v1193
        %v1337 = vpop.f32.mrb[0].mxu0
        %v1338 = vadd.f32 0.0, %v1337
        %v1339 = vpop.f32.mrb[0].mxu0
        %v1340 = vadd.f32 0.0, %v1339
        %v1341 = vpop.f32.mrb[0].mxu0
        %v1342 = vadd.f32 0.0, %v1341
        %v1343 = vpop.f32.mrb[0].mxu0
        %v1344 = vadd.f32 0.0, %v1343
        %1345 = vmatprep.mubr.bf16.mxu0 0
        %1346 = vmatmul.mubr.bf16.gmra.mrb[0].mxu0 %v1196
        %v1347 = vpop.f32.mrb[0].mxu0
        %v1348 = vadd.f32 0.0, %v1347
        %v1349 = vpop.f32.mrb[0].mxu0
        %v1350 = vadd.f32 0.0, %v1349
        %v1351 = vpop.f32.mrb[0].mxu0
        %v1352 = vadd.f32 0.0, %v1351
        %v1353 = vpop.f32.mrb[0].mxu0
        %v1354 = vadd.f32 0.0, %v1353
        %1355 = vmatprep.mubr.bf16.mxu0 0
        %1356 = vmatmul.mubr.bf16.gmra.mrb[0].mxu0 %v1199
        %v1357 = vpop.f32.mrb[0].mxu0
        %v1358 = vadd.f32 0.0, %v1357
        %v1359 = vpop.f32.mrb[0].mxu0
        %v1360 = vadd.f32 0.0, %v1359
        %v1361 = vpop.f32.mrb[0].mxu0
        %v1362 = vadd.f32 0.0, %v1361
        %v1363 = vpop.f32.mrb[0].mxu0
        %v1364 = vadd.f32 0.0, %v1363
        %1365 = vmatprep.mubr.bf16.mxu0 0
        %1366 = vmatmul.mubr.bf16.gmra.mrb[0].mxu0 %v1202
        %v1367 = vpop.f32.mrb[0].mxu0
        %v1368 = vadd.f32 0.0, %v1367
        %v1369 = vpop.f32.mrb[0].mxu0
        %v1370 = vadd.f32 0.0, %v1369
        %v1371 = vpop.f32.mrb[0].mxu0
        %v1372 = vadd.f32 0.0, %v1371
        %v1373 = vpop.f32.mrb[0].mxu0
        %v1374 = vadd.f32 0.0, %v1373
        %1375 = vmatprep.mubr.bf16.mxu0 0
        %1376 = vmatmul.mubr.bf16.gmra.mrb[0].mxu0 %v1205
        %v1377 = vpop.f32.mrb[0].mxu0
        %v1378 = vadd.f32 0.0, %v1377
        %v1379 = vpop.f32.mrb[0].mxu0
        %v1380 = vadd.f32 0.0, %v1379
        %v1381 = vpop.f32.mrb[0].mxu0
        %v1382 = vadd.f32 0.0, %v1381
        %v1383 = vpop.f32.mrb[0].mxu0
        %v1384 = vadd.f32 0.0, %v1383
        %1385 = vmatprep.mubr.bf16.mxu0 0
        %1386 = vmatmul.mubr.bf16.gmra.mrb[0].mxu0 %v1208
        %v1387 = vpop.f32.mrb[0].mxu0
        %v1388 = vadd.f32 0.0, %v1387
        %v1389 = vpop.f32.mrb[0].mxu0
        %v1390 = vadd.f32 0.0, %v1389
        %v1391 = vpop.f32.mrb[0].mxu0
        %v1392 = vadd.f32 0.0, %v1391
        %v1393 = vpop.f32.mrb[0].mxu0
        %v1394 = vadd.f32 0.0, %v1393
        %1395 = vmatprep.mubr.bf16.mxu0 0
        %1396 = vmatmul.mubr.bf16.gmra.mrb[0].mxu0 %v1211
        %v1397 = vpop.f32.mrb[0].mxu0
        %v1398 = vadd.f32 0.0, %v1397
        %v1399 = vpop.f32.mrb[0].mxu0
        %v1400 = vadd.f32 0.0, %v1399
        %v1401 = vpop.f32.mrb[0].mxu0
        %v1402 = vadd.f32 0.0, %v1401
        %v1403 = vpop.f32.mrb[0].mxu0
        %v1404 = vadd.f32 0.0, %v1403
        %1405 = vmatprep.mubr.bf16.mxu0 0
        %1406 = vmatmul.mubr.bf16.gmra.mrb[0].mxu0 %v1214
        %v1407 = vpop.f32.mrb[0].mxu0
        %v1408 = vadd.f32 0.0, %v1407
        %v1409 = vpop.f32.mrb[0].mxu0
        %v1410 = vadd.f32 0.0, %v1409
        %v1411 = vpop.f32.mrb[0].mxu0
        %v1412 = vadd.f32 0.0, %v1411
        %v1413 = vpop.f32.mrb[0].mxu0
        %v1414 = vadd.f32 0.0, %v1413
        %1415 = vdwg.mxu0
        %v1416 = vadd.f32 %v601, %v1258
        %v1417 = vadd.f32 %v605, %v1262
        %v1418 = vadd.f32 %v611, %v1268
        %v1419 = vadd.f32 %v615, %v1272
        %v1420 = vadd.f32 %v621, %v1278
        %v1421 = vadd.f32 %v625, %v1282
        %v1422 = vadd.f32 %v631, %v1288
        %v1423 = vadd.f32 %v635, %v1292
        %v1424 = vadd.f32 %v641, %v1298
        %v1425 = vadd.f32 %v645, %v1302
        %v1426 = vadd.f32 %v651, %v1308
        %v1427 = vadd.f32 %v655, %v1312
        %v1428 = vadd.f32 %v661, %v1318
        %v1429 = vadd.f32 %v665, %v1322
        %v1430 = vadd.f32 %v671, %v1328
        %v1431 = vadd.f32 %v675, %v1332
        %v1432 = vadd.f32 %v681, %v1338
        %v1433 = vadd.f32 %v685, %v1342
        %v1434 = vadd.f32 %v691, %v1348
        %v1435 = vadd.f32 %v695, %v1352
        %v1436 = vadd.f32 %v701, %v1358
        %v1437 = vadd.f32 %v705, %v1362
        %v1438 = vadd.f32 %v711, %v1368
        %v1439 = vadd.f32 %v715, %v1372
        %v1440 = vadd.f32 %v721, %v1378
        %v1441 = vadd.f32 %v725, %v1382
        %v1442 = vadd.f32 %v731, %v1388
        %v1443 = vadd.f32 %v735, %v1392
        %v1444 = vadd.f32 %v741, %v1398
        %v1445 = vadd.f32 %v745, %v1402
        %v1446 = vadd.f32 %v751, %v1408
        %v1447 = vadd.f32 %v755, %v1412
        %1448 = vst [vmem:[%s257] sm:$0xff] %v1416
        %1449 = vst [vmem:[%s257 + $0x18] sm:$0xff] %v1417
        %1450 = vst [vmem:[%s257 + $0x30] sm:$0xff] %v1418
        %1451 = vst [vmem:[%s257 + $0x48] sm:$0xff] %v1419
        %1452 = vst [vmem:[%s257 + $0x60] sm:$0xff] %v1420
        %1453 = vst [vmem:[%s257 + $0x78] sm:$0xff] %v1421
        %1454 = vst [vmem:[%s257 + $0x90] sm:$0xff] %v1422
        %1455 = vst [vmem:[%s257 + $0xa8] sm:$0xff] %v1423
        %1456 = vst [vmem:[%s257 + $0xc0] sm:$0xff] %v1424
        %1457 = vst [vmem:[%s257 + $0xd8] sm:$0xff] %v1425
        %1458 = vst [vmem:[%s257 + $0xf0] sm:$0xff] %v1426
        %1459 = vst [vmem:[%s257 + $0x108] sm:$0xff] %v1427
        %1460 = vst [vmem:[%s257 + $0x120] sm:$0xff] %v1428
        %1461 = vst [vmem:[%s257 + $0x138] sm:$0xff] %v1429
        %1462 = vst [vmem:[%s257 + $0x150] sm:$0xff] %v1430
        %1463 = vst [vmem:[%s257 + $0x168] sm:$0xff] %v1431
        %1464 = vst [vmem:[%s257 + $0x180] sm:$0xff] %v1432
        %1465 = vst [vmem:[%s257 + $0x198] sm:$0xff] %v1433
        %1466 = vst [vmem:[%s257 + $0x1b0] sm:$0xff] %v1434
        %1467 = vst [vmem:[%s257 + $0x1c8] sm:$0xff] %v1435
        %1468 = vst [vmem:[%s257 + $0x1e0] sm:$0xff] %v1436
        %1469 = vst [vmem:[%s257 + $0x1f8] sm:$0xff] %v1437
        %1470 = vst [vmem:[%s257 + $0x210] sm:$0xff] %v1438
        %1471 = vst [vmem:[%s257 + $0x228] sm:$0xff] %v1439
        %1472 = vst [vmem:[%s257 + $0x240] sm:$0xff] %v1440
        %1473 = vst [vmem:[%s257 + $0x258] sm:$0xff] %v1441
        %1474 = vst [vmem:[%s257 + $0x270] sm:$0xff] %v1442
        %1475 = vst [vmem:[%s257 + $0x288] sm:$0xff] %v1443
        %1476 = vst [vmem:[%s257 + $0x2a0] sm:$0xff] %v1444
        %1477 = vst [vmem:[%s257 + $0x2b8] sm:$0xff] %v1445
        %1478 = vst [vmem:[%s257 + $0x2d0] sm:$0xff] %v1446
        %1479 = vst [vmem:[%s257 + $0x2e8] sm:$0xff] %v1447
        %1480 = vst [vmem:[%s257 + $0x8] sm:$0xff] %v603
        %1481 = vst [vmem:[%s257 + $0x20] sm:$0xff] %v607
        %1482 = vst [vmem:[%s257 + $0x38] sm:$0xff] %v613
        %1483 = vst [vmem:[%s257 + $0x50] sm:$0xff] %v617
        %1484 = vst [vmem:[%s257 + $0x68] sm:$0xff] %v623
        %1485 = vst [vmem:[%s257 + $0x80] sm:$0xff] %v627
        %1486 = vst [vmem:[%s257 + $0x98] sm:$0xff] %v633
        %1487 = vst [vmem:[%s257 + $0xb0] sm:$0xff] %v637
        %1488 = vst [vmem:[%s257 + $0xc8] sm:$0xff] %v643
        %1489 = vst [vmem:[%s257 + $0xe0] sm:$0xff] %v647
        %1490 = vst [vmem:[%s257 + $0xf8] sm:$0xff] %v653
        %1491 = vst [vmem:[%s257 + $0x110] sm:$0xff] %v657
        %1492 = vst [vmem:[%s257 + $0x128] sm:$0xff] %v663
        %1493 = vst [vmem:[%s257 + $0x140] sm:$0xff] %v667
        %1494 = vst [vmem:[%s257 + $0x158] sm:$0xff] %v673
        %1495 = vst [vmem:[%s257 + $0x170] sm:$0xff] %v677
        %1496 = vst [vmem:[%s257 + $0x188] sm:$0xff] %v683
        %1497 = vst [vmem:[%s257 + $0x1a0] sm:$0xff] %v687
        %1498 = vst [vmem:[%s257 + $0x1b8] sm:$0xff] %v693
        %1499 = vst [vmem:[%s257 + $0x1d0] sm:$0xff] %v697
        %1500 = vst [vmem:[%s257 + $0x1e8] sm:$0xff] %v703
        %1501 = vst [vmem:[%s257 + $0x200] sm:$0xff] %v707
        %1502 = vst [vmem:[%s257 + $0x218] sm:$0xff] %v713
        %1503 = vst [vmem:[%s257 + $0x230] sm:$0xff] %v717
        %1504 = vst [vmem:[%s257 + $0x248] sm:$0xff] %v723
        %1505 = vst [vmem:[%s257 + $0x260] sm:$0xff] %v727
        %1506 = vst [vmem:[%s257 + $0x278] sm:$0xff] %v733
        %1507 = vst [vmem:[%s257 + $0x290] sm:$0xff] %v737
        %1508 = vst [vmem:[%s257 + $0x2a8] sm:$0xff] %v743
        %1509 = vst [vmem:[%s257 + $0x2c0] sm:$0xff] %v747
        %1510 = vst [vmem:[%s257 + $0x2d8] sm:$0xff] %v753
        %1511 = vst [vmem:[%s257 + $0x2f0] sm:$0xff] %v757
        %v1512 = vadd.f32 %v794, %v1260
        %v1513 = vadd.f32 %v797, %v1264
        %v1514 = vadd.f32 %v802, %v1270
        %v1515 = vadd.f32 %v805, %v1274
        %v1516 = vadd.f32 %v810, %v1280
        %v1517 = vadd.f32 %v813, %v1284
        %v1518 = vadd.f32 %v818, %v1290
        %v1519 = vadd.f32 %v821, %v1294
        %v1520 = vadd.f32 %v826, %v1300
        %v1521 = vadd.f32 %v829, %v1304
        %v1522 = vadd.f32 %v834, %v1310
        %v1523 = vadd.f32 %v837, %v1314
        %v1524 = vadd.f32 %v842, %v1320
        %v1525 = vadd.f32 %v845, %v1324
        %v1526 = vadd.f32 %v850, %v1330
        %v1527 = vadd.f32 %v853, %v1334
        %v1528 = vadd.f32 %v858, %v1340
        %v1529 = vadd.f32 %v861, %v1344
        %v1530 = vadd.f32 %v866, %v1350
        %v1531 = vadd.f32 %v869, %v1354
        %v1532 = vadd.f32 %v874, %v1360
        %v1533 = vadd.f32 %v877, %v1364
        %v1534 = vadd.f32 %v882, %v1370
        %v1535 = vadd.f32 %v885, %v1374
        %v1536 = vadd.f32 %v890, %v1380
        %v1537 = vadd.f32 %v893, %v1384
        %v1538 = vadd.f32 %v898, %v1390
        %v1539 = vadd.f32 %v901, %v1394
        %v1540 = vadd.f32 %v906, %v1400
        %v1541 = vadd.f32 %v909, %v1404
        %v1542 = vadd.f32 %v914, %v1410
        %v1543 = vadd.f32 %v917, %v1414
        %1544 = vst [vmem:[%s257 + $0x10] sm:$0xff] %v1512
        %1545 = vst [vmem:[%s257 + $0x28] sm:$0xff] %v1513
        %1546 = vst [vmem:[%s257 + $0x40] sm:$0xff] %v1514
        %1547 = vst [vmem:[%s257 + $0x58] sm:$0xff] %v1515
        %1548 = vst [vmem:[%s257 + $0x70] sm:$0xff] %v1516
        %1549 = vst [vmem:[%s257 + $0x88] sm:$0xff] %v1517
        %1550 = vst [vmem:[%s257 + $0xa0] sm:$0xff] %v1518
        %1551 = vst [vmem:[%s257 + $0xb8] sm:$0xff] %v1519
        %1552 = vst [vmem:[%s257 + $0xd0] sm:$0xff] %v1520
        %1553 = vst [vmem:[%s257 + $0xe8] sm:$0xff] %v1521
        %1554 = vst [vmem:[%s257 + $0x100] sm:$0xff] %v1522
        %1555 = vst [vmem:[%s257 + $0x118] sm:$0xff] %v1523
        %1556 = vst [vmem:[%s257 + $0x130] sm:$0xff] %v1524
        %1557 = vst [vmem:[%s257 + $0x148] sm:$0xff] %v1525
        %1558 = vst [vmem:[%s257 + $0x160] sm:$0xff] %v1526
        %1559 = vst [vmem:[%s257 + $0x178] sm:$0xff] %v1527
        %1560 = vst [vmem:[%s257 + $0x190] sm:$0xff] %v1528
        %1561 = vst [vmem:[%s257 + $0x1a8] sm:$0xff] %v1529
        %1562 = vst [vmem:[%s257 + $0x1c0] sm:$0xff] %v1530
        %1563 = vst [vmem:[%s257 + $0x1d8] sm:$0xff] %v1531
        %1564 = vst [vmem:[%s257 + $0x1f0] sm:$0xff] %v1532
        %1565 = vst [vmem:[%s257 + $0x208] sm:$0xff] %v1533
        %1566 = vst [vmem:[%s257 + $0x220] sm:$0xff] %v1534
        %1567 = vst [vmem:[%s257 + $0x238] sm:$0xff] %v1535
        %1568 = vst [vmem:[%s257 + $0x250] sm:$0xff] %v1536
        %1569 = vst [vmem:[%s257 + $0x268] sm:$0xff] %v1537
        %1570 = vst [vmem:[%s257 + $0x280] sm:$0xff] %v1538
        %1571 = vst [vmem:[%s257 + $0x298] sm:$0xff] %v1539
        %1572 = vst [vmem:[%s257 + $0x2b0] sm:$0xff] %v1540
        %1573 = vst [vmem:[%s257 + $0x2c8] sm:$0xff] %v1541
        %1574 = vst [vmem:[%s257 + $0x2e0] sm:$0xff] %v1542
        %1575 = vst [vmem:[%s257 + $0x2f8] sm:$0xff] %v1543
        %s1576 = sand.u32 %s141, 1
        %s1577 = scalar_lea.sflag [#allocation4], %s1576
        %s1578 = sand.u32 %s141, 1
        %s1579 = smul.addr %s1578, 768
        %s1580 = scalar_lea.vmem [#allocation7], %s1579
        // Predicated region
        $region49: #{tpu_custom_call.1} parent=39 // pred_check
          %p1581 = pneg %p151
        $region50: #{tpu_custom_call.1} parent=39 // pred_check_branch
          %1583 = sbr.rel (%p1581) target = $region52
        $region51: #{tpu_custom_call.1} parent=39 // pred_region
          %s1584 = smul.u32 32, %s23
          %s1586 = ssub.s32 12288, 12288
          %1587 = vsyncadd %s1577, %s1586
          %s1588 = smul.addr %s1584, 3
          %s1589 = smul.addr %s1588, 128
          %s1590 = scalar_lea.hbm %s5, %s1589
          %s1591 = sshll.u32 %s1580, 4
          %s1592 = int_to_ptr.vmem [resolvable:$true] %s1591
          %1597 = dma.vmem_to_hbm [thread:$0]  %s1592, 12288, %s1590, %s1577, 384, 384, 24
        $region52: #{tpu_custom_call.1} parent=39 // pred_fallthru
          _
      $region40: #{tpu_custom_call.1} parent=5 // pred_fallthru
        _
      %p1598 = scmp.le.s32.totalorder 2, %s18
      // Predicated region
      $region53: #{tpu_custom_call.1} parent=5 // pred_check
        %p1599 = pneg %p1598
      $region54: #{tpu_custom_call.1} parent=5 // pred_check_branch
        %1601 = sbr.rel (%p1599) target = $region56
      $region55: #{tpu_custom_call.1} parent=5 // pred_region
        %s1602 = ssub.s32 %s18, 2
        // Predicated region
        $region57: #{tpu_custom_call.1} parent=55 // pred_check
          %p1603 = pneg %p157
        $region58: #{tpu_custom_call.1} parent=55 // pred_check_branch
          %1605 = sbr.rel (%p1603) target = $region60
        $region59: #{tpu_custom_call.1} parent=55 // pred_region
          %s1606 = sand.u32 %s142, 1
          %s1607 = scalar_lea.sflag [#allocation4], %s1606
          %s1608 = sand.u32 %s142, 1
          %s1609 = smul.addr %s1608, 768
          %s1610 = scalar_lea.vmem [#allocation7], %s1609
          %1611 = dma.done %s1607, 12288
        $region60: #{tpu_custom_call.1} parent=55 // pred_fallthru
          _
      $region56: #{tpu_custom_call.1} parent=5 // pred_fallthru
        _
    $region6: #{tpu_custom_call.1} parent=1 // loop_footer
      %s22 = sadd.s32 1, %s18
    $region7: #{tpu_custom_call.1} parent=1 // loop_footer_branch
      %17 = sbr.rel target = $region3
    $region8: #{tpu_custom_call.1} parent=1 // loop_exit
      _
    %1612 = vsyncpa [#allocation3], 1
    %s1613 = scalar_lea.sflag [#allocation3], 1
    %1614 = vsyncpa %s1613, 1
    %1615 = vsyncpa [#allocation6], 1
    %1616 = vsyncpa [#allocation4], 1
    %s1617 = scalar_lea.sflag [#allocation4], 1
    %1618 = vsyncpa %s1617, 1

</llo_original>
